<compile_context>
chip_gen: v7x
topology: tpu7x:2x2x1
jax: 0.10.0
libtpu: 0.0.40
codegen_flags: <defaults>
</compile_context>

<pallas_src>
import functools

import jax
import jax.numpy as jnp
from jax.experimental import pallas as pl
from jax.experimental.pallas import tpu as pltpu


def _round_up(x, m):
    return (x + m - 1) // m * m


def _vmem_limit(est_bytes):
    """Clamp a footprint estimate into a sane scoped-VMEM limit."""
    return int(min(max(int(est_bytes * 1.3) + (1 << 20), 32 * 1024 * 1024),
                   100 * 1024 * 1024))


# ---------------------------------------------------------------------------
# Kernel 1: chunked LSTM recurrence, input projection fused per chunk.
# ---------------------------------------------------------------------------
def _lstm_chunk_kernel(x_ref, wih_ref, b_ref, whh_ref, h_out_ref,
                       h_carry, c_carry, gates_buf, h_buf, *, hp, t_chunk):
    """One grid step = (one batch block) x (one chunk of t_chunk timesteps).

    grid = (B // b_block, Tp // t_chunk), semantics ("parallel", "arbitrary").
    h/c are carried in f32 VMEM scratch across the sequential T axis and are
    re-initialized whenever the T-axis program id is 0, i.e. at the start of
    every batch block (scratch is per-core, so this is megacore-safe).
    """
    @pl.when(pl.program_id(1) == 0)
    def _():
        h_carry[...] = jnp.zeros_like(h_carry)
        c_carry[...] = jnp.zeros_like(c_carry)

    bb = x_ref.shape[0]
    ep = x_ref.shape[2]

    # ---- Phase A: input projection for the whole chunk in ONE MXU matmul ----
    x_chunk = x_ref[...].reshape(bb * t_chunk, ep)
    gx = jnp.dot(x_chunk, wih_ref[...], preferred_element_type=jnp.float32)
    gx = gx + b_ref[...].astype(jnp.float32)          # fused b_ih + b_hh
    # Stage in VMEM scratch so only ONE timestep's gates are ever live in
    # vregs during the unrolled recurrence (bounds register pressure).
    gates_buf[...] = gx.reshape(bb, t_chunk, 4 * hp)

    # ---- Phase B: sequential recurrence; only h @ W_hh^T per timestep -------
    h = h_carry[...]
    c = c_carry[...]
    w_hh = whh_ref[...]
    for t in range(t_chunk):                           # static unroll, <= 32
        gates = gates_buf[:, t, :] + jnp.dot(
            h.astype(w_hh.dtype), w_hh, preferred_element_type=jnp.float32)
        # hp % 128 == 0  =>  each gate slice is a free lane-aligned view.
        i_g = jax.nn.sigmoid(gates[:, 0 * hp:1 * hp])
        f_g = jax.nn.sigmoid(gates[:, 1 * hp:2 * hp])
        g_g = jnp.tanh(gates[:, 2 * hp:3 * hp])
        o_g = jax.nn.sigmoid(gates[:, 3 * hp:4 * hp])
        c = f_g * c + i_g * g_g
        h = o_g * jnp.tanh(c)
        h_buf[:, t, :] = h                             # small VMEM staging store

    h_carry[...] = h
    c_carry[...] = c
    # Single full-tile, lane/sublane-dense store to the pipelined output block.
    h_out_ref[...] = h_buf[...].astype(h_out_ref.dtype)


def lstm_chunked_pallas(inputs, w_ih_t, b_gates, w_hh_t, *, hp,
                        max_t_chunk=32, batch_blocks=1, out_dtype=None):
    """inputs: (B, T, E) batch-first (unpadded).  Weights pre-transposed and
    128-lane padded at prep time: w_ih_t (Ep, 4*Hp), w_hh_t (Hp, 4*Hp),
    b_gates (1, 4*Hp) = b_ih + b_hh.  Returns hidden states (B, T, Hp)."""
    B, T, E = inputs.shape
    Ep = w_ih_t.shape[0]
    assert hp % 128 == 0 and Ep % 128 == 0 and E <= Ep
    assert B % batch_blocks == 0, "batch_blocks must divide B"
    assert max_t_chunk % 8 == 0
    bb = B // batch_blocks
    compute_dtype = w_ih_t.dtype
    out_dtype = out_dtype or compute_dtype

    # Chunk the time axis; pad T with zero timesteps (discarded afterwards)
    # instead of falling back to a single full-T chunk.
    t_chunk = _round_up(T, 8) if T <= max_t_chunk else max_t_chunk
    Tp = _round_up(T, t_chunk)

    x = inputs.astype(compute_dtype)
    if (Tp, Ep) != (T, E):
        x = jnp.pad(x, ((0, 0), (0, Tp - T), (0, Ep - E)))

    itm = jnp.dtype(compute_dtype).itemsize
    oitm = jnp.dtype(out_dtype).itemsize
    est = 2 * (bb * t_chunk * Ep * itm                     # x block (dbl buf)
               + bb * t_chunk * hp * oitm                  # out block (dbl buf)
               + (Ep + hp) * 4 * hp * itm + 4 * hp * 4)    # weights + bias
    est += 4 * (2 * bb * hp + bb * t_chunk * 5 * hp)       # f32 scratch

    h_all = pl.pallas_call(
        functools.partial(_lstm_chunk_kernel, hp=hp, t_chunk=t_chunk),
        out_shape=jax.ShapeDtypeStruct((B, Tp, hp), out_dtype),
        grid_spec=pltpu.PrefetchScalarGridSpec(
            num_scalar_prefetch=0,
            grid=(batch_blocks, Tp // t_chunk),
            in_specs=[
                pl.BlockSpec((bb, t_chunk, Ep), lambda b, n: (b, n, 0)),
                # Constant index maps: Pallas fetches these once and keeps them
                # VMEM-resident across every grid step.
                # TODO(synk): at large H/E also pass pipeline_mode=pl.Buffered(1)
                # on these three specs to drop the unused second weight buffer
                # (matters on v7x's 64 MiB VMEM).
                pl.BlockSpec((Ep, 4 * hp), lambda b, n: (0, 0)),   # W_ih^T
                pl.BlockSpec((1, 4 * hp), lambda b, n: (0, 0)),    # b_ih + b_hh
                pl.BlockSpec((hp, 4 * hp), lambda b, n: (0, 0)),   # W_hh^T
            ],
            out_specs=pl.BlockSpec((bb, t_chunk, hp), lambda b, n: (b, n, 0)),
            scratch_shapes=[
                pltpu.VMEM((bb, hp), jnp.float32),                 # h carry
                pltpu.VMEM((bb, hp), jnp.float32),                 # c carry
                pltpu.VMEM((bb, t_chunk, 4 * hp), jnp.float32),    # gates stage
                pltpu.VMEM((bb, t_chunk, hp), jnp.float32),        # h stage
            ],
        ),
        compiler_params=pltpu.CompilerParams(
            dimension_semantics=("parallel", "arbitrary"),   # batch || , T seq
            vmem_limit_bytes=_vmem_limit(est)),
    )(x, w_ih_t, b_gates, w_hh_t)

    return h_all[:, :T, :] if Tp != T else h_all


# ---------------------------------------------------------------------------
# Kernel 2: batched output projection  out = x @ w + b  (weight-resident tiling)
# ---------------------------------------------------------------------------
def _matmul_bias_kernel(x_ref, w_ref, b_ref, o_ref):
    o_ref[...] = (jnp.dot(x_ref[...], w_ref[...],
                          preferred_element_type=jnp.float32)
                  + b_ref[...].astype(jnp.float32)).astype(o_ref.dtype)


def matmul_bias_pallas(x, w, b, *, max_tm=256, max_tn=1024, out_dtype=None):
    """x: (M, K), w: (K, N), b: (1, N) with N % 128 == 0 (pre-padded ONCE at
    parameter-prep time, not per call).  Returns (M, N).

    Grid is (N tiles OUTER, row tiles INNER): the (vocab-sized) weight tile's
    index map is constant across the inner row axis, so W is streamed from HBM
    ~once instead of once per row tile.  K is kept whole per block."""
    M, K = x.shape
    Kw, N = w.shape
    assert K == Kw and b.shape == (1, N) and N % 128 == 0
    out_dtype = out_dtype or x.dtype

    tm = _round_up(M, 8) if M <= max_tm else max_tm
    Mp = _round_up(M, tm)
    tn = min(max_tn, N)
    while N % tn != 0:                       # largest 128-multiple dividing N
        tn -= 128

    xp = x if Mp == M else jnp.pad(x, ((0, Mp - M), (0, 0)))

    est = 2 * (tm * K * x.dtype.itemsize + K * tn * w.dtype.itemsize
               + tn * b.dtype.itemsize + tm * tn * jnp.dtype(out_dtype).itemsize)

    out = pl.pallas_call(
        _matmul_bias_kernel,
        out_shape=jax.ShapeDtypeStruct((Mp, N), out_dtype),
        grid_spec=pltpu.PrefetchScalarGridSpec(
            num_scalar_prefetch=0,
            grid=(N // tn, Mp // tm),                       # V outer, rows inner
            in_specs=[
                pl.BlockSpec((tm, K), lambda j, i: (i, 0)),
                pl.BlockSpec((K, tn), lambda j, i: (0, j)),  # resident over i
                pl.BlockSpec((1, tn), lambda j, i: (0, j)),
            ],
            out_specs=pl.BlockSpec((tm, tn), lambda j, i: (i, j)),
        ),
        compiler_params=pltpu.CompilerParams(
            dimension_semantics=("parallel", "parallel"),
            vmem_limit_bytes=_vmem_limit(est)),
    )(xp, w, b)

    return out[:M] if Mp != M else out


# ---------------------------------------------------------------------------
# Parameter init / one-time prep / forward / pure-JAX reference.
# ---------------------------------------------------------------------------
def init_decoder_params(key, embed_size, hidden_size, vocab_size):
    """Deterministic synthetic parameters (PyTorch-default-style uniform init),
    stored in PyTorch layout: w_ih (4H, E), w_hh (4H, H), w_lin (V, H)."""
    k = jax.random.split(key, 7)
    s = 1.0 / jnp.sqrt(hidden_size)
    return {
        "embed": jax.random.normal(k[0], (vocab_size, embed_size), jnp.float32),
        "w_ih": jax.random.uniform(k[1], (4 * hidden_size, embed_size),
                                   jnp.float32, -s, s),
        "w_hh": jax.random.uniform(k[2], (4 * hidden_size, hidden_size),
                                   jnp.float32, -s, s),
        "b_ih": jax.random.uniform(k[3], (4 * hidden_size,), jnp.float32, -s, s),
        "b_hh": jax.random.uniform(k[4], (4 * hidden_size,), jnp.float32, -s, s),
        "w_lin": jax.random.uniform(k[5], (vocab_size, hidden_size),
                                    jnp.float32, -s, s),
        "b_lin": jax.random.uniform(k[6], (vocab_size,), jnp.float32, -s, s),
    }


def prepare_decoder_params(params, *, compute_dtype=jnp.float32):
    """One-time weight prep: transpose + 128-lane pad (hoisted out of the
    per-call forward so the vocab-sized linear weight is never re-padded per
    call).  Gate blocks (i,f,g,o) each start on a 128-lane boundary; padded
    columns/bias are zero so padded h/c stay exactly zero.
    For production pass compute_dtype=jnp.bfloat16 (matmuls still accumulate
    in f32, h/c scratch stays f32) — relaxes exact f32 parity."""
    w_ih, w_hh = params["w_ih"], params["w_hh"]
    w_lin, b_lin = params["w_lin"], params["b_lin"]
    fourH, E = w_ih.shape
    H = fourH // 4
    V = w_lin.shape[0]
    Hp, Ep, Vp = _round_up(H, 128), _round_up(E, 128), _round_up(V, 128)

    b_fused = params["b_ih"] + params["b_hh"]
    w_ih_t = jnp.zeros((Ep, 4 * Hp), compute_dtype)
    w_hh_t = jnp.zeros((Hp, 4 * Hp), compute_dtype)
    b_gates = jnp.zeros((1, 4 * Hp), jnp.float32)
    for k in range(4):                               # PyTorch gate order i,f,g,o
        w_ih_t = w_ih_t.at[:E, k * Hp:k * Hp + H].set(
            w_ih[k * H:(k + 1) * H, :].T.astype(compute_dtype))
        w_hh_t = w_hh_t.at[:H, k * Hp:k * Hp + H].set(
            w_hh[k * H:(k + 1) * H, :].T.astype(compute_dtype))
        b_gates = b_gates.at[0, k * Hp:k * Hp + H].set(b_fused[k * H:(k + 1) * H])

    w_lin_t = jnp.zeros((Hp, Vp), compute_dtype).at[:H, :V].set(
        w_lin.T.astype(compute_dtype))
    b_lin_p = jnp.zeros((1, Vp), jnp.float32).at[0, :V].set(b_lin)

    return {
        "embed": params["embed"],
        "w_ih_t": w_ih_t, "w_hh_t": w_hh_t, "b_gates": b_gates,
        "w_lin_t": w_lin_t, "b_lin": b_lin_p,
        "dims": dict(E=E, H=H, V=V, Ep=Ep, Hp=Hp, Vp=Vp),
    }


def decoder_rnn_forward(features, captions, prep, *, max_t_chunk=32,
                        batch_blocks=1):
    """Matches DecoderRNN.forward.  features: (B, E) f32, captions: (B, L) i32.
    Returns logits (B, L, V) f32.  On v7x set batch_blocks=2 so the parallel
    batch axis feeds both TensorCores."""
    d = prep["dims"]
    # Glue (embedding gather + concat) stays in plain JAX, batch-first.
    emb = jnp.take(prep["embed"], captions[:, :-1], axis=0)        # (B, L-1, E)
    inputs = jnp.concatenate([features[:, None, :], emb], axis=1)  # (B, T, E)
    B, T, _ = inputs.shape

    h_all = lstm_chunked_pallas(inputs, prep["w_ih_t"], prep["b_gates"],
                                prep["w_hh_t"], hp=d["Hp"],
                                max_t_chunk=max_t_chunk,
                                batch_blocks=batch_blocks)          # (B, T, Hp)

    # Output projection batched over all B*T rows; padded Hp columns of h_all
    # are exactly zero and padded W_lin^T rows are zero, so no slicing needed.
    logits = matmul_bias_pallas(h_all.reshape(B * T, d["Hp"]),
                                prep["w_lin_t"], prep["b_lin"],
                                out_dtype=jnp.float32)              # (B*T, Vp)
    return logits[:, :d["V"]].reshape(B, T, d["V"])


def decoder_rnn_reference(features, captions, params):
    """Pure-JAX reference (lax.scan LSTM) for correctness checking."""
    emb = jnp.take(params["embed"], captions[:, :-1], axis=0)
    inputs = jnp.concatenate([features[:, None, :], emb], axis=1)
    B = inputs.shape[0]
    H = params["w_hh"].shape[1]

    def step(carry, x_t):
        h, c = carry
        gates = (x_t @ params["w_ih"].T + params["b_ih"]
                 + h @ params["w_hh"].T + params["b_hh"])
        i, f, g, o = jnp.split(gates, 4, axis=1)
        c = jax.nn.sigmoid(f) * c + jax.nn.sigmoid(i) * jnp.tanh(g)
        h = jax.nn.sigmoid(o) * jnp.tanh(c)
        return (h, c), h

    h0 = jnp.zeros((B, H), jnp.float32)
    c0 = jnp.zeros((B, H), jnp.float32)
    _, hs = jax.lax.scan(step, (h0, c0), jnp.transpose(inputs, (1, 0, 2)))
    lstm_out = jnp.transpose(hs, (1, 0, 2))
    return lstm_out @ params["w_lin"].T + params["b_lin"]


if __name__ == "__main__":
    # Small shapes consistent with the module's forward signature.
    batch = 2
    embed_size = 32
    hidden_size = 32
    vocab_size = 64
    caption_len = 8          # -> T = 1 + (caption_len - 1) = 8 timesteps

    key = jax.random.PRNGKey(0)
    k_feat, k_cap, k_par = jax.random.split(key, 3)

    features = jax.random.normal(k_feat, (batch, embed_size), jnp.float32)
    captions = jax.random.randint(k_cap, (batch, caption_len), 0, vocab_size,
                                  dtype=jnp.int32)
    params = init_decoder_params(k_par, embed_size, hidden_size, vocab_size)
    prep = prepare_decoder_params(params, compute_dtype=jnp.float32)

    out = decoder_rnn_forward(features, captions, prep, batch_blocks=1)
    out = jax.block_until_ready(out)

    ref = decoder_rnn_reference(features, captions, params)
    assert out.shape == (batch, caption_len, vocab_size)
    assert jnp.allclose(out, ref, atol=1e-4, rtol=1e-4), "mismatch vs reference"

    print("KERNEL_OK")
</pallas_src>

<mosaic_0001>
module attributes {stable_mosaic.version = 11 : i64} {
  func.func @_lstm_chunk_kernel(%arg0: i32, %arg1: i32, %arg2: memref<2x8x128xf32, #tpu.memory_space<vmem>>, %arg3: memref<128x512xf32, #tpu.memory_space<vmem>>, %arg4: memref<1x512xf32, #tpu.memory_space<vmem>>, %arg5: memref<128x512xf32, #tpu.memory_space<vmem>>, %arg6: memref<2x8x128xf32, #tpu.memory_space<vmem>>, %arg7: memref<2x128xf32, #tpu.memory_space<vmem>>, %arg8: memref<2x128xf32, #tpu.memory_space<vmem>>, %arg9: memref<2x8x512xf32, #tpu.memory_space<vmem>>, %arg10: memref<2x8x128xf32, #tpu.memory_space<vmem>>) attributes {dimension_semantics = [#tpu.dimension_semantics<parallel>, #tpu.dimension_semantics<arbitrary>], iteration_bounds = array<i64: 1, 1>, scalar_prefetch = 0 : i64, scratch_operands = 4 : i64, tpu.core_type = #tpu.core_type<tc>, window_params = [{transform_indices = @transform_0, window_bounds = array<i64: 2, 8, 128>}, {pipeline_mode = #tpu.pipeline_mode<synchronous>, transform_indices = @transform_1, window_bounds = array<i64: 128, 512>}, {pipeline_mode = #tpu.pipeline_mode<synchronous>, transform_indices = @transform_2, window_bounds = array<i64: 1, 512>}, {pipeline_mode = #tpu.pipeline_mode<synchronous>, transform_indices = @transform_3, window_bounds = array<i64: 128, 512>}, {transform_indices = @transform_4, window_bounds = array<i64: 2, 8, 128>}]} {
    %c0_i32 = arith.constant 0 : i32
    %0 = arith.cmpi eq, %arg1, %c0_i32 : i32
    %1 = arith.extui %0 : i1 to i32
    %c0_i32_0 = arith.constant 0 : i32
    %2 = arith.cmpi ne, %1, %c0_i32_0 : i32
    scf.if %2 {
      %cst_99 = arith.constant 0.000000e+00 : f32
      %275 = vector.broadcast %cst_99 : f32 to vector<2x128xf32>
      %c0_100 = arith.constant 0 : index
      %c0_101 = arith.constant 0 : index
      %276 = vector.load %arg7[%c0_100, %c0_101] : memref<2x128xf32, #tpu.memory_space<vmem>>, vector<2x128xf32>
      tpu.vector_store %arg7[%c0_100, %c0_101], %275 {strides = array<i32>} : memref<2x128xf32, #tpu.memory_space<vmem>>, vector<2x128xf32>,
      %cst_102 = arith.constant 0.000000e+00 : f32
      %277 = vector.broadcast %cst_102 : f32 to vector<2x128xf32>
      %c0_103 = arith.constant 0 : index
      %c0_104 = arith.constant 0 : index
      %278 = vector.load %arg8[%c0_103, %c0_104] : memref<2x128xf32, #tpu.memory_space<vmem>>, vector<2x128xf32>
      tpu.vector_store %arg8[%c0_103, %c0_104], %277 {strides = array<i32>} : memref<2x128xf32, #tpu.memory_space<vmem>>, vector<2x128xf32>,
    } else {
    }
    %c0 = arith.constant 0 : index
    %c0_1 = arith.constant 0 : index
    %c0_2 = arith.constant 0 : index
    %3 = vector.load %arg2[%c0, %c0_1, %c0_2] : memref<2x8x128xf32, #tpu.memory_space<vmem>>, vector<2x8x128xf32>
    %4 = vector.shape_cast %3 : vector<2x8x128xf32> to vector<16x128xf32>
    %c0_3 = arith.constant 0 : index
    %c0_4 = arith.constant 0 : index
    %5 = vector.load %arg3[%c0_3, %c0_4] : memref<128x512xf32, #tpu.memory_space<vmem>>, vector<128x512xf32>
    %cst = arith.constant dense<0.000000e+00> : vector<16x512xf32>
    %6 = tpu.matmul %4, %5, %cst {dimension_numbers = #tpu.dot_dimension_numbers<[1], [0], [0], [1], [0, 0, 1, 1], [], []>} : vector<16x128xf32>, vector<128x512xf32>, vector<16x512xf32> -> vector<16x512xf32>
    %c0_5 = arith.constant 0 : index
    %c0_6 = arith.constant 0 : index
    %7 = vector.load %arg4[%c0_5, %c0_6] : memref<1x512xf32, #tpu.memory_space<vmem>>, vector<1x512xf32>
    %8 = vector.broadcast %7 : vector<1x512xf32> to vector<16x512xf32>
    %9 = arith.addf %6, %8 : vector<16x512xf32>
    %10 = vector.shape_cast %9 : vector<16x512xf32> to vector<2x8x512xf32>
    %c0_7 = arith.constant 0 : index
    %c0_8 = arith.constant 0 : index
    %c0_9 = arith.constant 0 : index
    %11 = vector.load %arg9[%c0_7, %c0_8, %c0_9] : memref<2x8x512xf32, #tpu.memory_space<vmem>>, vector<2x8x512xf32>
    tpu.vector_store %arg9[%c0_7, %c0_8, %c0_9], %10 {strides = array<i32>} : memref<2x8x512xf32, #tpu.memory_space<vmem>>, vector<2x8x512xf32>,
    %c0_10 = arith.constant 0 : index
    %c0_11 = arith.constant 0 : index
    %12 = vector.load %arg7[%c0_10, %c0_11] : memref<2x128xf32, #tpu.memory_space<vmem>>, vector<2x128xf32>
    %c0_12 = arith.constant 0 : index
    %c0_13 = arith.constant 0 : index
    %13 = vector.load %arg8[%c0_12, %c0_13] : memref<2x128xf32, #tpu.memory_space<vmem>>, vector<2x128xf32>
    %c0_14 = arith.constant 0 : index
    %c0_15 = arith.constant 0 : index
    %14 = vector.load %arg5[%c0_14, %c0_15] : memref<128x512xf32, #tpu.memory_space<vmem>>, vector<128x512xf32>
    %c0_16 = arith.constant 0 : index
    %c0_17 = arith.constant 0 : index
    %c0_18 = arith.constant 0 : index
    %15 = vector.load %arg9[%c0_16, %c0_17, %c0_18] : memref<2x8x512xf32, #tpu.memory_space<vmem>>, vector<2x1x512xf32>
    %16 = vector.shape_cast %15 : vector<2x1x512xf32> to vector<2x512xf32>
    %cst_19 = arith.constant dense<0.000000e+00> : vector<2x512xf32>
    %17 = tpu.matmul %12, %14, %cst_19 {dimension_numbers = #tpu.dot_dimension_numbers<[1], [0], [0], [1], [0, 0, 1, 1], [], []>} : vector<2x128xf32>, vector<128x512xf32>, vector<2x512xf32> -> vector<2x512xf32>
    %18 = arith.addf %16, %17 : vector<2x512xf32>
    %19 = vector.extract_strided_slice %18 {offsets = [0, 0], sizes = [2, 128], strides = [1, 1]} : vector<2x512xf32> to vector<2x128xf32>
    %20 = arith.negf %19 : vector<2x128xf32>
    %21 = math.exp %20 : vector<2x128xf32>
    %cst_20 = arith.constant 1.000000e+00 : f32
    %22 = vector.broadcast %cst_20 : f32 to vector<2x128xf32>
    %23 = arith.addf %22, %21 : vector<2x128xf32>
    %24 = arith.divf %22, %23 : vector<2x128xf32>
    %25 = vector.extract_strided_slice %18 {offsets = [0, 128], sizes = [2, 128], strides = [1, 1]} : vector<2x512xf32> to vector<2x128xf32>
    %26 = arith.negf %25 : vector<2x128xf32>
    %27 = math.exp %26 : vector<2x128xf32>
    %cst_21 = arith.constant 1.000000e+00 : f32
    %28 = vector.broadcast %cst_21 : f32 to vector<2x128xf32>
    %29 = arith.addf %28, %27 : vector<2x128xf32>
    %30 = arith.divf %28, %29 : vector<2x128xf32>
    %31 = vector.extract_strided_slice %18 {offsets = [0, 256], sizes = [2, 128], strides = [1, 1]} : vector<2x512xf32> to vector<2x128xf32>
    %32 = math.tanh %31 : vector<2x128xf32>
    %33 = vector.extract_strided_slice %18 {offsets = [0, 384], sizes = [2, 128], strides = [1, 1]} : vector<2x512xf32> to vector<2x128xf32>
    %34 = arith.negf %33 : vector<2x128xf32>
    %35 = math.exp %34 : vector<2x128xf32>
    %cst_22 = arith.constant 1.000000e+00 : f32
    %36 = vector.broadcast %cst_22 : f32 to vector<2x128xf32>
    %37 = arith.addf %36, %35 : vector<2x128xf32>
    %38 = arith.divf %36, %37 : vector<2x128xf32>
    %39 = arith.mulf %30, %13 : vector<2x128xf32>
    %40 = arith.mulf %24, %32 : vector<2x128xf32>
    %41 = arith.addf %39, %40 : vector<2x128xf32>
    %42 = math.tanh %41 : vector<2x128xf32>
    %43 = arith.mulf %38, %42 : vector<2x128xf32>
    %c0_23 = arith.constant 0 : index
    %c0_24 = arith.constant 0 : index
    %c0_25 = arith.constant 0 : index
    %44 = vector.load %arg10[%c0_23, %c0_24, %c0_25] : memref<2x8x128xf32, #tpu.memory_space<vmem>>, vector<2x1x128xf32>
    %45 = vector.shape_cast %44 : vector<2x1x128xf32> to vector<2x128xf32>
    %46 = vector.shape_cast %43 : vector<2x128xf32> to vector<2x1x128xf32>
    tpu.vector_store %arg10[%c0_23, %c0_24, %c0_25], %46 {strides = array<i32>} : memref<2x8x128xf32, #tpu.memory_space<vmem>>, vector<2x1x128xf32>,
    %c0_26 = arith.constant 0 : index
    %c1 = arith.constant 1 : index
    %c0_27 = arith.constant 0 : index
    %47 = vector.load %arg9[%c0_26, %c1, %c0_27] : memref<2x8x512xf32, #tpu.memory_space<vmem>>, vector<2x1x512xf32>
    %48 = vector.shape_cast %47 : vector<2x1x512xf32> to vector<2x512xf32>
    %cst_28 = arith.constant dense<0.000000e+00> : vector<2x512xf32>
    %49 = tpu.matmul %43, %14, %cst_28 {dimension_numbers = #tpu.dot_dimension_numbers<[1], [0], [0], [1], [0, 0, 1, 1], [], []>} : vector<2x128xf32>, vector<128x512xf32>, vector<2x512xf32> -> vector<2x512xf32>
    %50 = arith.addf %48, %49 : vector<2x512xf32>
    %51 = vector.extract_strided_slice %50 {offsets = [0, 0], sizes = [2, 128], strides = [1, 1]} : vector<2x512xf32> to vector<2x128xf32>
    %52 = arith.negf %51 : vector<2x128xf32>
    %53 = math.exp %52 : vector<2x128xf32>
    %cst_29 = arith.constant 1.000000e+00 : f32
    %54 = vector.broadcast %cst_29 : f32 to vector<2x128xf32>
    %55 = arith.addf %54, %53 : vector<2x128xf32>
    %56 = arith.divf %54, %55 : vector<2x128xf32>
    %57 = vector.extract_strided_slice %50 {offsets = [0, 128], sizes = [2, 128], strides = [1, 1]} : vector<2x512xf32> to vector<2x128xf32>
    %58 = arith.negf %57 : vector<2x128xf32>
    %59 = math.exp %58 : vector<2x128xf32>
    %cst_30 = arith.constant 1.000000e+00 : f32
    %60 = vector.broadcast %cst_30 : f32 to vector<2x128xf32>
    %61 = arith.addf %60, %59 : vector<2x128xf32>
    %62 = arith.divf %60, %61 : vector<2x128xf32>
    %63 = vector.extract_strided_slice %50 {offsets = [0, 256], sizes = [2, 128], strides = [1, 1]} : vector<2x512xf32> to vector<2x128xf32>
    %64 = math.tanh %63 : vector<2x128xf32>
    %65 = vector.extract_strided_slice %50 {offsets = [0, 384], sizes = [2, 128], strides = [1, 1]} : vector<2x512xf32> to vector<2x128xf32>
    %66 = arith.negf %65 : vector<2x128xf32>
    %67 = math.exp %66 : vector<2x128xf32>
    %cst_31 = arith.constant 1.000000e+00 : f32
    %68 = vector.broadcast %cst_31 : f32 to vector<2x128xf32>
    %69 = arith.addf %68, %67 : vector<2x128xf32>
    %70 = arith.divf %68, %69 : vector<2x128xf32>
    %71 = arith.mulf %62, %41 : vector<2x128xf32>
    %72 = arith.mulf %56, %64 : vector<2x128xf32>
    %73 = arith.addf %71, %72 : vector<2x128xf32>
    %74 = math.tanh %73 : vector<2x128xf32>
    %75 = arith.mulf %70, %74 : vector<2x128xf32>
    %c0_32 = arith.constant 0 : index
    %c1_33 = arith.constant 1 : index
    %c0_34 = arith.constant 0 : index
    %76 = vector.load %arg10[%c0_32, %c1_33, %c0_34] : memref<2x8x128xf32, #tpu.memory_space<vmem>>, vector<2x1x128xf32>
    %77 = vector.shape_cast %76 : vector<2x1x128xf32> to vector<2x128xf32>
    %78 = vector.shape_cast %75 : vector<2x128xf32> to vector<2x1x128xf32>
    tpu.vector_store %arg10[%c0_32, %c1_33, %c0_34], %78 {strides = array<i32>} : memref<2x8x128xf32, #tpu.memory_space<vmem>>, vector<2x1x128xf32>,
    %c0_35 = arith.constant 0 : index
    %c2 = arith.constant 2 : index
    %c0_36 = arith.constant 0 : index
    %79 = vector.load %arg9[%c0_35, %c2, %c0_36] : memref<2x8x512xf32, #tpu.memory_space<vmem>>, vector<2x1x512xf32>
    %80 = vector.shape_cast %79 : vector<2x1x512xf32> to vector<2x512xf32>
    %cst_37 = arith.constant dense<0.000000e+00> : vector<2x512xf32>
    %81 = tpu.matmul %75, %14, %cst_37 {dimension_numbers = #tpu.dot_dimension_numbers<[1], [0], [0], [1], [0, 0, 1, 1], [], []>} : vector<2x128xf32>, vector<128x512xf32>, vector<2x512xf32> -> vector<2x512xf32>
    %82 = arith.addf %80, %81 : vector<2x512xf32>
    %83 = vector.extract_strided_slice %82 {offsets = [0, 0], sizes = [2, 128], strides = [1, 1]} : vector<2x512xf32> to vector<2x128xf32>
    %84 = arith.negf %83 : vector<2x128xf32>
    %85 = math.exp %84 : vector<2x128xf32>
    %cst_38 = arith.constant 1.000000e+00 : f32
    %86 = vector.broadcast %cst_38 : f32 to vector<2x128xf32>
    %87 = arith.addf %86, %85 : vector<2x128xf32>
    %88 = arith.divf %86, %87 : vector<2x128xf32>
    %89 = vector.extract_strided_slice %82 {offsets = [0, 128], sizes = [2, 128], strides = [1, 1]} : vector<2x512xf32> to vector<2x128xf32>
    %90 = arith.negf %89 : vector<2x128xf32>
    %91 = math.exp %90 : vector<2x128xf32>
    %cst_39 = arith.constant 1.000000e+00 : f32
    %92 = vector.broadcast %cst_39 : f32 to vector<2x128xf32>
    %93 = arith.addf %92, %91 : vector<2x128xf32>
    %94 = arith.divf %92, %93 : vector<2x128xf32>
    %95 = vector.extract_strided_slice %82 {offsets = [0, 256], sizes = [2, 128], strides = [1, 1]} : vector<2x512xf32> to vector<2x128xf32>
    %96 = math.tanh %95 : vector<2x128xf32>
    %97 = vector.extract_strided_slice %82 {offsets = [0, 384], sizes = [2, 128], strides = [1, 1]} : vector<2x512xf32> to vector<2x128xf32>
    %98 = arith.negf %97 : vector<2x128xf32>
    %99 = math.exp %98 : vector<2x128xf32>
    %cst_40 = arith.constant 1.000000e+00 : f32
    %100 = vector.broadcast %cst_40 : f32 to vector<2x128xf32>
    %101 = arith.addf %100, %99 : vector<2x128xf32>
    %102 = arith.divf %100, %101 : vector<2x128xf32>
    %103 = arith.mulf %94, %73 : vector<2x128xf32>
    %104 = arith.mulf %88, %96 : vector<2x128xf32>
    %105 = arith.addf %103, %104 : vector<2x128xf32>
    %106 = math.tanh %105 : vector<2x128xf32>
    %107 = arith.mulf %102, %106 : vector<2x128xf32>
    %c0_41 = arith.constant 0 : index
    %c2_42 = arith.constant 2 : index
    %c0_43 = arith.constant 0 : index
    %108 = vector.load %arg10[%c0_41, %c2_42, %c0_43] : memref<2x8x128xf32, #tpu.memory_space<vmem>>, vector<2x1x128xf32>
    %109 = vector.shape_cast %108 : vector<2x1x128xf32> to vector<2x128xf32>
    %110 = vector.shape_cast %107 : vector<2x128xf32> to vector<2x1x128xf32>
    tpu.vector_store %arg10[%c0_41, %c2_42, %c0_43], %110 {strides = array<i32>} : memref<2x8x128xf32, #tpu.memory_space<vmem>>, vector<2x1x128xf32>,
    %c0_44 = arith.constant 0 : index
    %c3 = arith.constant 3 : index
    %c0_45 = arith.constant 0 : index
    %111 = vector.load %arg9[%c0_44, %c3, %c0_45] : memref<2x8x512xf32, #tpu.memory_space<vmem>>, vector<2x1x512xf32>
    %112 = vector.shape_cast %111 : vector<2x1x512xf32> to vector<2x512xf32>
    %cst_46 = arith.constant dense<0.000000e+00> : vector<2x512xf32>
    %113 = tpu.matmul %107, %14, %cst_46 {dimension_numbers = #tpu.dot_dimension_numbers<[1], [0], [0], [1], [0, 0, 1, 1], [], []>} : vector<2x128xf32>, vector<128x512xf32>, vector<2x512xf32> -> vector<2x512xf32>
    %114 = arith.addf %112, %113 : vector<2x512xf32>
    %115 = vector.extract_strided_slice %114 {offsets = [0, 0], sizes = [2, 128], strides = [1, 1]} : vector<2x512xf32> to vector<2x128xf32>
    %116 = arith.negf %115 : vector<2x128xf32>
    %117 = math.exp %116 : vector<2x128xf32>
    %cst_47 = arith.constant 1.000000e+00 : f32
    %118 = vector.broadcast %cst_47 : f32 to vector<2x128xf32>
    %119 = arith.addf %118, %117 : vector<2x128xf32>
    %120 = arith.divf %118, %119 : vector<2x128xf32>
    %121 = vector.extract_strided_slice %114 {offsets = [0, 128], sizes = [2, 128], strides = [1, 1]} : vector<2x512xf32> to vector<2x128xf32>
    %122 = arith.negf %121 : vector<2x128xf32>
    %123 = math.exp %122 : vector<2x128xf32>
    %cst_48 = arith.constant 1.000000e+00 : f32
    %124 = vector.broadcast %cst_48 : f32 to vector<2x128xf32>
    %125 = arith.addf %124, %123 : vector<2x128xf32>
    %126 = arith.divf %124, %125 : vector<2x128xf32>
    %127 = vector.extract_strided_slice %114 {offsets = [0, 256], sizes = [2, 128], strides = [1, 1]} : vector<2x512xf32> to vector<2x128xf32>
    %128 = math.tanh %127 : vector<2x128xf32>
    %129 = vector.extract_strided_slice %114 {offsets = [0, 384], sizes = [2, 128], strides = [1, 1]} : vector<2x512xf32> to vector<2x128xf32>
    %130 = arith.negf %129 : vector<2x128xf32>
    %131 = math.exp %130 : vector<2x128xf32>
    %cst_49 = arith.constant 1.000000e+00 : f32
    %132 = vector.broadcast %cst_49 : f32 to vector<2x128xf32>
    %133 = arith.addf %132, %131 : vector<2x128xf32>
    %134 = arith.divf %132, %133 : vector<2x128xf32>
    %135 = arith.mulf %126, %105 : vector<2x128xf32>
    %136 = arith.mulf %120, %128 : vector<2x128xf32>
    %137 = arith.addf %135, %136 : vector<2x128xf32>
    %138 = math.tanh %137 : vector<2x128xf32>
    %139 = arith.mulf %134, %138 : vector<2x128xf32>
    %c0_50 = arith.constant 0 : index
    %c3_51 = arith.constant 3 : index
    %c0_52 = arith.constant 0 : index
    %140 = vector.load %arg10[%c0_50, %c3_51, %c0_52] : memref<2x8x128xf32, #tpu.memory_space<vmem>>, vector<2x1x128xf32>
    %141 = vector.shape_cast %140 : vector<2x1x128xf32> to vector<2x128xf32>
    %142 = vector.shape_cast %139 : vector<2x128xf32> to vector<2x1x128xf32>
    tpu.vector_store %arg10[%c0_50, %c3_51, %c0_52], %142 {strides = array<i32>} : memref<2x8x128xf32, #tpu.memory_space<vmem>>, vector<2x1x128xf32>,
    %c0_53 = arith.constant 0 : index
    %c4 = arith.constant 4 : index
    %c0_54 = arith.constant 0 : index
    %143 = vector.load %arg9[%c0_53, %c4, %c0_54] : memref<2x8x512xf32, #tpu.memory_space<vmem>>, vector<2x1x512xf32>
    %144 = vector.shape_cast %143 : vector<2x1x512xf32> to vector<2x512xf32>
    %cst_55 = arith.constant dense<0.000000e+00> : vector<2x512xf32>
    %145 = tpu.matmul %139, %14, %cst_55 {dimension_numbers = #tpu.dot_dimension_numbers<[1], [0], [0], [1], [0, 0, 1, 1], [], []>} : vector<2x128xf32>, vector<128x512xf32>, vector<2x512xf32> -> vector<2x512xf32>
    %146 = arith.addf %144, %145 : vector<2x512xf32>
    %147 = vector.extract_strided_slice %146 {offsets = [0, 0], sizes = [2, 128], strides = [1, 1]} : vector<2x512xf32> to vector<2x128xf32>
    %148 = arith.negf %147 : vector<2x128xf32>
    %149 = math.exp %148 : vector<2x128xf32>
    %cst_56 = arith.constant 1.000000e+00 : f32
    %150 = vector.broadcast %cst_56 : f32 to vector<2x128xf32>
    %151 = arith.addf %150, %149 : vector<2x128xf32>
    %152 = arith.divf %150, %151 : vector<2x128xf32>
    %153 = vector.extract_strided_slice %146 {offsets = [0, 128], sizes = [2, 128], strides = [1, 1]} : vector<2x512xf32> to vector<2x128xf32>
    %154 = arith.negf %153 : vector<2x128xf32>
    %155 = math.exp %154 : vector<2x128xf32>
    %cst_57 = arith.constant 1.000000e+00 : f32
    %156 = vector.broadcast %cst_57 : f32 to vector<2x128xf32>
    %157 = arith.addf %156, %155 : vector<2x128xf32>
    %158 = arith.divf %156, %157 : vector<2x128xf32>
    %159 = vector.extract_strided_slice %146 {offsets = [0, 256], sizes = [2, 128], strides = [1, 1]} : vector<2x512xf32> to vector<2x128xf32>
    %160 = math.tanh %159 : vector<2x128xf32>
    %161 = vector.extract_strided_slice %146 {offsets = [0, 384], sizes = [2, 128], strides = [1, 1]} : vector<2x512xf32> to vector<2x128xf32>
    %162 = arith.negf %161 : vector<2x128xf32>
    %163 = math.exp %162 : vector<2x128xf32>
    %cst_58 = arith.constant 1.000000e+00 : f32
    %164 = vector.broadcast %cst_58 : f32 to vector<2x128xf32>
    %165 = arith.addf %164, %163 : vector<2x128xf32>
    %166 = arith.divf %164, %165 : vector<2x128xf32>
    %167 = arith.mulf %158, %137 : vector<2x128xf32>
    %168 = arith.mulf %152, %160 : vector<2x128xf32>
    %169 = arith.addf %167, %168 : vector<2x128xf32>
    %170 = math.tanh %169 : vector<2x128xf32>
    %171 = arith.mulf %166, %170 : vector<2x128xf32>
    %c0_59 = arith.constant 0 : index
    %c4_60 = arith.constant 4 : index
    %c0_61 = arith.constant 0 : index
    %172 = vector.load %arg10[%c0_59, %c4_60, %c0_61] : memref<2x8x128xf32, #tpu.memory_space<vmem>>, vector<2x1x128xf32>
    %173 = vector.shape_cast %172 : vector<2x1x128xf32> to vector<2x128xf32>
    %174 = vector.shape_cast %171 : vector<2x128xf32> to vector<2x1x128xf32>
    tpu.vector_store %arg10[%c0_59, %c4_60, %c0_61], %174 {strides = array<i32>} : memref<2x8x128xf32, #tpu.memory_space<vmem>>, vector<2x1x128xf32>,
    %c0_62 = arith.constant 0 : index
    %c5 = arith.constant 5 : index
    %c0_63 = arith.constant 0 : index
    %175 = vector.load %arg9[%c0_62, %c5, %c0_63] : memref<2x8x512xf32, #tpu.memory_space<vmem>>, vector<2x1x512xf32>
    %176 = vector.shape_cast %175 : vector<2x1x512xf32> to vector<2x512xf32>
    %cst_64 = arith.constant dense<0.000000e+00> : vector<2x512xf32>
    %177 = tpu.matmul %171, %14, %cst_64 {dimension_numbers = #tpu.dot_dimension_numbers<[1], [0], [0], [1], [0, 0, 1, 1], [], []>} : vector<2x128xf32>, vector<128x512xf32>, vector<2x512xf32> -> vector<2x512xf32>
    %178 = arith.addf %176, %177 : vector<2x512xf32>
    %179 = vector.extract_strided_slice %178 {offsets = [0, 0], sizes = [2, 128], strides = [1, 1]} : vector<2x512xf32> to vector<2x128xf32>
    %180 = arith.negf %179 : vector<2x128xf32>
    %181 = math.exp %180 : vector<2x128xf32>
    %cst_65 = arith.constant 1.000000e+00 : f32
    %182 = vector.broadcast %cst_65 : f32 to vector<2x128xf32>
    %183 = arith.addf %182, %181 : vector<2x128xf32>
    %184 = arith.divf %182, %183 : vector<2x128xf32>
    %185 = vector.extract_strided_slice %178 {offsets = [0, 128], sizes = [2, 128], strides = [1, 1]} : vector<2x512xf32> to vector<2x128xf32>
    %186 = arith.negf %185 : vector<2x128xf32>
    %187 = math.exp %186 : vector<2x128xf32>
    %cst_66 = arith.constant 1.000000e+00 : f32
    %188 = vector.broadcast %cst_66 : f32 to vector<2x128xf32>
    %189 = arith.addf %188, %187 : vector<2x128xf32>
    %190 = arith.divf %188, %189 : vector<2x128xf32>
    %191 = vector.extract_strided_slice %178 {offsets = [0, 256], sizes = [2, 128], strides = [1, 1]} : vector<2x512xf32> to vector<2x128xf32>
    %192 = math.tanh %191 : vector<2x128xf32>
    %193 = vector.extract_strided_slice %178 {offsets = [0, 384], sizes = [2, 128], strides = [1, 1]} : vector<2x512xf32> to vector<2x128xf32>
    %194 = arith.negf %193 : vector<2x128xf32>
    %195 = math.exp %194 : vector<2x128xf32>
    %cst_67 = arith.constant 1.000000e+00 : f32
    %196 = vector.broadcast %cst_67 : f32 to vector<2x128xf32>
    %197 = arith.addf %196, %195 : vector<2x128xf32>
    %198 = arith.divf %196, %197 : vector<2x128xf32>
    %199 = arith.mulf %190, %169 : vector<2x128xf32>
    %200 = arith.mulf %184, %192 : vector<2x128xf32>
    %201 = arith.addf %199, %200 : vector<2x128xf32>
    %202 = math.tanh %201 : vector<2x128xf32>
    %203 = arith.mulf %198, %202 : vector<2x128xf32>
    %c0_68 = arith.constant 0 : index
    %c5_69 = arith.constant 5 : index
    %c0_70 = arith.constant 0 : index
    %204 = vector.load %arg10[%c0_68, %c5_69, %c0_70] : memref<2x8x128xf32, #tpu.memory_space<vmem>>, vector<2x1x128xf32>
    %205 = vector.shape_cast %204 : vector<2x1x128xf32> to vector<2x128xf32>
    %206 = vector.shape_cast %203 : vector<2x128xf32> to vector<2x1x128xf32>
    tpu.vector_store %arg10[%c0_68, %c5_69, %c0_70], %206 {strides = array<i32>} : memref<2x8x128xf32, #tpu.memory_space<vmem>>, vector<2x1x128xf32>,
    %c0_71 = arith.constant 0 : index
    %c6 = arith.constant 6 : index
    %c0_72 = arith.constant 0 : index
    %207 = vector.load %arg9[%c0_71, %c6, %c0_72] : memref<2x8x512xf32, #tpu.memory_space<vmem>>, vector<2x1x512xf32>
    %208 = vector.shape_cast %207 : vector<2x1x512xf32> to vector<2x512xf32>
    %cst_73 = arith.constant dense<0.000000e+00> : vector<2x512xf32>
    %209 = tpu.matmul %203, %14, %cst_73 {dimension_numbers = #tpu.dot_dimension_numbers<[1], [0], [0], [1], [0, 0, 1, 1], [], []>} : vector<2x128xf32>, vector<128x512xf32>, vector<2x512xf32> -> vector<2x512xf32>
    %210 = arith.addf %208, %209 : vector<2x512xf32>
    %211 = vector.extract_strided_slice %210 {offsets = [0, 0], sizes = [2, 128], strides = [1, 1]} : vector<2x512xf32> to vector<2x128xf32>
    %212 = arith.negf %211 : vector<2x128xf32>
    %213 = math.exp %212 : vector<2x128xf32>
    %cst_74 = arith.constant 1.000000e+00 : f32
    %214 = vector.broadcast %cst_74 : f32 to vector<2x128xf32>
    %215 = arith.addf %214, %213 : vector<2x128xf32>
    %216 = arith.divf %214, %215 : vector<2x128xf32>
    %217 = vector.extract_strided_slice %210 {offsets = [0, 128], sizes = [2, 128], strides = [1, 1]} : vector<2x512xf32> to vector<2x128xf32>
    %218 = arith.negf %217 : vector<2x128xf32>
    %219 = math.exp %218 : vector<2x128xf32>
    %cst_75 = arith.constant 1.000000e+00 : f32
    %220 = vector.broadcast %cst_75 : f32 to vector<2x128xf32>
    %221 = arith.addf %220, %219 : vector<2x128xf32>
    %222 = arith.divf %220, %221 : vector<2x128xf32>
    %223 = vector.extract_strided_slice %210 {offsets = [0, 256], sizes = [2, 128], strides = [1, 1]} : vector<2x512xf32> to vector<2x128xf32>
    %224 = math.tanh %223 : vector<2x128xf32>
    %225 = vector.extract_strided_slice %210 {offsets = [0, 384], sizes = [2, 128], strides = [1, 1]} : vector<2x512xf32> to vector<2x128xf32>
    %226 = arith.negf %225 : vector<2x128xf32>
    %227 = math.exp %226 : vector<2x128xf32>
    %cst_76 = arith.constant 1.000000e+00 : f32
    %228 = vector.broadcast %cst_76 : f32 to vector<2x128xf32>
    %229 = arith.addf %228, %227 : vector<2x128xf32>
    %230 = arith.divf %228, %229 : vector<2x128xf32>
    %231 = arith.mulf %222, %201 : vector<2x128xf32>
    %232 = arith.mulf %216, %224 : vector<2x128xf32>
    %233 = arith.addf %231, %232 : vector<2x128xf32>
    %234 = math.tanh %233 : vector<2x128xf32>
    %235 = arith.mulf %230, %234 : vector<2x128xf32>
    %c0_77 = arith.constant 0 : index
    %c6_78 = arith.constant 6 : index
    %c0_79 = arith.constant 0 : index
    %236 = vector.load %arg10[%c0_77, %c6_78, %c0_79] : memref<2x8x128xf32, #tpu.memory_space<vmem>>, vector<2x1x128xf32>
    %237 = vector.shape_cast %236 : vector<2x1x128xf32> to vector<2x128xf32>
    %238 = vector.shape_cast %235 : vector<2x128xf32> to vector<2x1x128xf32>
    tpu.vector_store %arg10[%c0_77, %c6_78, %c0_79], %238 {strides = array<i32>} : memref<2x8x128xf32, #tpu.memory_space<vmem>>, vector<2x1x128xf32>,
    %c0_80 = arith.constant 0 : index
    %c7 = arith.constant 7 : index
    %c0_81 = arith.constant 0 : index
    %239 = vector.load %arg9[%c0_80, %c7, %c0_81] : memref<2x8x512xf32, #tpu.memory_space<vmem>>, vector<2x1x512xf32>
    %240 = vector.shape_cast %239 : vector<2x1x512xf32> to vector<2x512xf32>
    %cst_82 = arith.constant dense<0.000000e+00> : vector<2x512xf32>
    %241 = tpu.matmul %235, %14, %cst_82 {dimension_numbers = #tpu.dot_dimension_numbers<[1], [0], [0], [1], [0, 0, 1, 1], [], []>} : vector<2x128xf32>, vector<128x512xf32>, vector<2x512xf32> -> vector<2x512xf32>
    %242 = arith.addf %240, %241 : vector<2x512xf32>
    %243 = vector.extract_strided_slice %242 {offsets = [0, 0], sizes = [2, 128], strides = [1, 1]} : vector<2x512xf32> to vector<2x128xf32>
    %244 = arith.negf %243 : vector<2x128xf32>
    %245 = math.exp %244 : vector<2x128xf32>
    %cst_83 = arith.constant 1.000000e+00 : f32
    %246 = vector.broadcast %cst_83 : f32 to vector<2x128xf32>
    %247 = arith.addf %246, %245 : vector<2x128xf32>
    %248 = arith.divf %246, %247 : vector<2x128xf32>
    %249 = vector.extract_strided_slice %242 {offsets = [0, 128], sizes = [2, 128], strides = [1, 1]} : vector<2x512xf32> to vector<2x128xf32>
    %250 = arith.negf %249 : vector<2x128xf32>
    %251 = math.exp %250 : vector<2x128xf32>
    %cst_84 = arith.constant 1.000000e+00 : f32
    %252 = vector.broadcast %cst_84 : f32 to vector<2x128xf32>
    %253 = arith.addf %252, %251 : vector<2x128xf32>
    %254 = arith.divf %252, %253 : vector<2x128xf32>
    %255 = vector.extract_strided_slice %242 {offsets = [0, 256], sizes = [2, 128], strides = [1, 1]} : vector<2x512xf32> to vector<2x128xf32>
    %256 = math.tanh %255 : vector<2x128xf32>
    %257 = vector.extract_strided_slice %242 {offsets = [0, 384], sizes = [2, 128], strides = [1, 1]} : vector<2x512xf32> to vector<2x128xf32>
    %258 = arith.negf %257 : vector<2x128xf32>
    %259 = math.exp %258 : vector<2x128xf32>
    %cst_85 = arith.constant 1.000000e+00 : f32
    %260 = vector.broadcast %cst_85 : f32 to vector<2x128xf32>
    %261 = arith.addf %260, %259 : vector<2x128xf32>
    %262 = arith.divf %260, %261 : vector<2x128xf32>
    %263 = arith.mulf %254, %233 : vector<2x128xf32>
    %264 = arith.mulf %248, %256 : vector<2x128xf32>
    %265 = arith.addf %263, %264 : vector<2x128xf32>
    %266 = math.tanh %265 : vector<2x128xf32>
    %267 = arith.mulf %262, %266 : vector<2x128xf32>
    %c0_86 = arith.constant 0 : index
    %c7_87 = arith.constant 7 : index
    %c0_88 = arith.constant 0 : index
    %268 = vector.load %arg10[%c0_86, %c7_87, %c0_88] : memref<2x8x128xf32, #tpu.memory_space<vmem>>, vector<2x1x128xf32>
    %269 = vector.shape_cast %268 : vector<2x1x128xf32> to vector<2x128xf32>
    %270 = vector.shape_cast %267 : vector<2x128xf32> to vector<2x1x128xf32>
    tpu.vector_store %arg10[%c0_86, %c7_87, %c0_88], %270 {strides = array<i32>} : memref<2x8x128xf32, #tpu.memory_space<vmem>>, vector<2x1x128xf32>,
    %c0_89 = arith.constant 0 : index
    %c0_90 = arith.constant 0 : index
    %271 = vector.load %arg7[%c0_89, %c0_90] : memref<2x128xf32, #tpu.memory_space<vmem>>, vector<2x128xf32>
    tpu.vector_store %arg7[%c0_89, %c0_90], %267 {strides = array<i32>} : memref<2x128xf32, #tpu.memory_space<vmem>>, vector<2x128xf32>,
    %c0_91 = arith.constant 0 : index
    %c0_92 = arith.constant 0 : index
    %272 = vector.load %arg8[%c0_91, %c0_92] : memref<2x128xf32, #tpu.memory_space<vmem>>, vector<2x128xf32>
    tpu.vector_store %arg8[%c0_91, %c0_92], %265 {strides = array<i32>} : memref<2x128xf32, #tpu.memory_space<vmem>>, vector<2x128xf32>,
    %c0_93 = arith.constant 0 : index
    %c0_94 = arith.constant 0 : index
    %c0_95 = arith.constant 0 : index
    %273 = vector.load %arg10[%c0_93, %c0_94, %c0_95] : memref<2x8x128xf32, #tpu.memory_space<vmem>>, vector<2x8x128xf32>
    %c0_96 = arith.constant 0 : index
    %c0_97 = arith.constant 0 : index
    %c0_98 = arith.constant 0 : index
    %274 = vector.load %arg6[%c0_96, %c0_97, %c0_98] : memref<2x8x128xf32, #tpu.memory_space<vmem>>, vector<2x8x128xf32>
    tpu.vector_store %arg6[%c0_96, %c0_97, %c0_98], %273 {strides = array<i32>} : memref<2x8x128xf32, #tpu.memory_space<vmem>>, vector<2x8x128xf32>,
    return
  }
  func.func @transform_0(%arg0: i32, %arg1: i32) -> (i32, i32, i32) {
    %c0_i32 = arith.constant 0 : i32
    %c0_i32_0 = arith.constant 0 : i32
    return %arg0, %arg1, %c0_i32 : i32, i32, i32
  }
  func.func @transform_1(%arg0: i32, %arg1: i32) -> (i32, i32) {
    %c0_i32 = arith.constant 0 : i32
    %c0_i32_0 = arith.constant 0 : i32
    %c0_i32_1 = arith.constant 0 : i32
    return %c0_i32, %c0_i32_0 : i32, i32
  }
  func.func @transform_2(%arg0: i32, %arg1: i32) -> (i32, i32) {
    %c0_i32 = arith.constant 0 : i32
    %c0_i32_0 = arith.constant 0 : i32
    %c0_i32_1 = arith.constant 0 : i32
    return %c0_i32, %c0_i32_0 : i32, i32
  }
  func.func @transform_3(%arg0: i32, %arg1: i32) -> (i32, i32) {
    %c0_i32 = arith.constant 0 : i32
    %c0_i32_0 = arith.constant 0 : i32
    %c0_i32_1 = arith.constant 0 : i32
    return %c0_i32, %c0_i32_0 : i32, i32
  }
  func.func @transform_4(%arg0: i32, %arg1: i32) -> (i32, i32, i32) {
    %c0_i32 = arith.constant 0 : i32
    %c0_i32_0 = arith.constant 0 : i32
    return %arg0, %arg1, %c0_i32 : i32, i32, i32
  }
}

</mosaic_0001>

<llo_original>
// kernel: tpu_custom_call.1
$region0: #{tpu_custom_call.1}
  #allocation0 [shape = 'u32[]', space=smem, size = 0x4, offset = 0x4, fixed_abs, tag = 'smem constant byte address 0x4 - core index']
  #allocation1 [shape = 'u32[144,128]{1,0:T(1,128)}', space=vmem, size = 0x12000, scoped, tag = 'internal scratch']
  #allocation2 [shape = 'f32[2,128]{1,0:T(2,128)}', space=vmem, size = 0x400, scoped, tag = 'scratch operand']
  #allocation3 [shape = 'f32[2,128]{1,0:T(2,128)}', space=vmem, size = 0x400, scoped, tag = 'scratch operand']
  #allocation4 [shape = 'f32[2,8,512]{2,1,0:T(8,128)}', space=vmem, size = 0x8000, scoped, tag = 'scratch operand']
  #allocation5 [shape = 'f32[2,8,128]{2,1,0:T(8,128)}', space=vmem, size = 0x2000, scoped, tag = 'scratch operand']
  %s0 = inlined_call_operand.hbm [shape: f32[2,8,128], index: 0, kind: input, shape index: {}]
  %s1 = inlined_call_operand.hbm [shape: f32[128,512], index: 1, kind: input, shape index: {}]
  %s2 = inlined_call_operand.vmem [shape: f32[1,512], index: 2, kind: input, shape index: {}]
  %s3 = inlined_call_operand.hbm [shape: f32[128,512], index: 3, kind: input, shape index: {}]
  %s4 = inlined_call_operand.hbm [shape: f32[2,8,128], index: 4, kind: output, shape index: {}]
  %s5 = sld [smem:[#allocation0]]
  $region42: #{tpu_custom_call.1} parent=0
    _
  %s7 = ssub.s32 1, %s5
  %s8 = scalar_select 0, %s7, %s5
  $region1: #{tpu_custom_call.1} parent=0
    #allocation6 [shape = 'u8[8192]{0}', space=vmem, size = 0x2000, scoped, tag = 'input window, operand 0, single buffered']
    #allocation7 [shape = 's32[1]{0}', space=sflag, size = 0x4, scoped, tag = 'scoped memory for tpu_custom_call.1']
    #allocation8 [shape = 's32[1]{0}', space=sflag, size = 0x4, scoped, tag = 'scoped memory for tpu_custom_call.1']
    #allocation9 [shape = 'u8[262144]{0}', space=vmem, size = 0x40000, scoped, tag = 'input window, operand 1, single buffered']
    #allocation10 [shape = 's32[1]{0}', space=sflag, size = 0x4, scoped, tag = 'scoped memory for tpu_custom_call.1']
    #allocation11 [shape = 'u8[262144]{0}', space=vmem, size = 0x40000, scoped, tag = 'input window, operand 3, single buffered']
    #allocation12 [shape = 'u8[8192]{0}', space=vmem, size = 0x2000, scoped, tag = 'output window, operand 0, single buffered']
    %9 = vsyncpa [#allocation7], 0
    %10 = vsyncpa [#allocation10], 0
    %11 = vsyncpa [#allocation8], 0
    // Predicated region
    $region2: #{tpu_custom_call.1} parent=1 // pred_check
      _
    $region3: #{tpu_custom_call.1} parent=1 // pred_check_branch
      %13 = sbr.rel (0) target = $region5
    $region4: #{tpu_custom_call.1} parent=1 // pred_region
      %s15 = ssub.s32 256, 256
      %16 = vsyncadd [#allocation7], %s15
      %s17 = sshll.u32 [#allocation6], 4
      %s18 = int_to_ptr.vmem [resolvable:$true] %s17
      %23 = dma.hbm_to_vmem [thread:$0]  %s0, 256, %s18, [#allocation7], 128, 128, 8
    $region5: #{tpu_custom_call.1} parent=1 // pred_fallthru
      _
    // Predicated region
    $region6: #{tpu_custom_call.1} parent=1 // pred_check
      _
    $region7: #{tpu_custom_call.1} parent=1 // pred_check_branch
      %25 = sbr.rel (0) target = $region9
    $region8: #{tpu_custom_call.1} parent=1 // pred_region
      %s27 = ssub.s32 8192, 8192
      %28 = vsyncadd [#allocation10], %s27
      %s29 = sshll.u32 [#allocation9], 4
      %s30 = int_to_ptr.vmem [resolvable:$true] %s29
      %35 = dma.hbm_to_vmem [thread:$0]  %s1, 8192, %s30, [#allocation10], 512, 512, 32
    $region9: #{tpu_custom_call.1} parent=1 // pred_fallthru
      _
    // Predicated region
    $region10: #{tpu_custom_call.1} parent=1 // pred_check
      _
    $region11: #{tpu_custom_call.1} parent=1 // pred_check_branch
      %37 = sbr.rel (0) target = $region13
    $region12: #{tpu_custom_call.1} parent=1 // pred_region
      _
    $region13: #{tpu_custom_call.1} parent=1 // pred_fallthru
      _
    // Predicated region
    $region14: #{tpu_custom_call.1} parent=1 // pred_check
      _
    $region15: #{tpu_custom_call.1} parent=1 // pred_check_branch
      %39 = sbr.rel (0) target = $region17
    $region16: #{tpu_custom_call.1} parent=1 // pred_region
      %s41 = ssub.s32 8192, 8192
      %42 = vsyncadd [#allocation10], %s41
      %s43 = sshll.u32 [#allocation11], 4
      %s44 = int_to_ptr.vmem [resolvable:$true] %s43
      %49 = dma.hbm_to_vmem [thread:$0]  %s3, 8192, %s44, [#allocation10], 512, 512, 32
    $region17: #{tpu_custom_call.1} parent=1 // pred_fallthru
      _
    // Predicated region
    $region18: #{tpu_custom_call.1} parent=1 // pred_check
      _
    $region19: #{tpu_custom_call.1} parent=1 // pred_check_branch
      %51 = sbr.rel (0) target = $region21
    $region20: #{tpu_custom_call.1} parent=1 // pred_region
      %52 = dma.done [#allocation7], 256
    $region21: #{tpu_custom_call.1} parent=1 // pred_fallthru
      _
    // Predicated region
    $region22: #{tpu_custom_call.1} parent=1 // pred_check
      _
    $region23: #{tpu_custom_call.1} parent=1 // pred_check_branch
      %54 = sbr.rel (0) target = $region25
    $region24: #{tpu_custom_call.1} parent=1 // pred_region
      %55 = dma.done [#allocation10], 8192
    $region25: #{tpu_custom_call.1} parent=1 // pred_fallthru
      _
    // Predicated region
    $region26: #{tpu_custom_call.1} parent=1 // pred_check
      _
    $region27: #{tpu_custom_call.1} parent=1 // pred_check_branch
      %57 = sbr.rel (0) target = $region29
    $region28: #{tpu_custom_call.1} parent=1 // pred_region
      %58 = dma.done [#allocation10], 8192
    $region29: #{tpu_custom_call.1} parent=1 // pred_fallthru
      _
    %p59 = scmp.eq.s32.totalorder 0, 0
    // Predicated region
    $region30: #{tpu_custom_call.1} parent=1 // pred_check
      %p60 = pneg %p59
    $region31: #{tpu_custom_call.1} parent=1 // pred_check_branch
      %62 = sbr.rel (%p60) target = $region33
    $region32: #{tpu_custom_call.1} parent=1 // pred_region
      %63 = vst [vmem:[#allocation2] sm:$0x3] 0.0
      %64 = vst [vmem:[#allocation3] sm:$0x3] 0.0
    $region33: #{tpu_custom_call.1} parent=1 // pred_fallthru
      _
    %v65 = vld [vmem:[#allocation6] sm:$0xff]
    %v66 = vld [vmem:[#allocation6 + $0x8] sm:$0xff]
    %v67 = vld [vmem:[#allocation9] sm:$0xff]
    %v68 = vld [vmem:[#allocation9 + $0x8] sm:$0xff]
    %v69 = vld [vmem:[#allocation9 + $0x10] sm:$0xff]
    %v70 = vld [vmem:[#allocation9 + $0x18] sm:$0xff]
    %v71 = vld [vmem:[#allocation9 + $0x20] sm:$0xff]
    %v72 = vld [vmem:[#allocation9 + $0x28] sm:$0xff]
    %v73 = vld [vmem:[#allocation9 + $0x30] sm:$0xff]
    %v74 = vld [vmem:[#allocation9 + $0x38] sm:$0xff]
    %v75 = vld [vmem:[#allocation9 + $0x40] sm:$0xff]
    %v76 = vld [vmem:[#allocation9 + $0x48] sm:$0xff]
    %v77 = vld [vmem:[#allocation9 + $0x50] sm:$0xff]
    %v78 = vld [vmem:[#allocation9 + $0x58] sm:$0xff]
    %v79 = vld [vmem:[#allocation9 + $0x60] sm:$0xff]
    %v80 = vld [vmem:[#allocation9 + $0x68] sm:$0xff]
    %v81 = vld [vmem:[#allocation9 + $0x70] sm:$0xff]
    %v82 = vld [vmem:[#allocation9 + $0x78] sm:$0xff]
    %v83 = vld [vmem:[#allocation9 + $0x80] sm:$0xff]
    %v84 = vld [vmem:[#allocation9 + $0x88] sm:$0xff]
    %v85 = vld [vmem:[#allocation9 + $0x90] sm:$0xff]
    %v86 = vld [vmem:[#allocation9 + $0x98] sm:$0xff]
    %v87 = vld [vmem:[#allocation9 + $0xa0] sm:$0xff]
    %v88 = vld [vmem:[#allocation9 + $0xa8] sm:$0xff]
    %v89 = vld [vmem:[#allocation9 + $0xb0] sm:$0xff]
    %v90 = vld [vmem:[#allocation9 + $0xb8] sm:$0xff]
    %v91 = vld [vmem:[#allocation9 + $0xc0] sm:$0xff]
    %v92 = vld [vmem:[#allocation9 + $0xc8] sm:$0xff]
    %v93 = vld [vmem:[#allocation9 + $0xd0] sm:$0xff]
    %v94 = vld [vmem:[#allocation9 + $0xd8] sm:$0xff]
    %v95 = vld [vmem:[#allocation9 + $0xe0] sm:$0xff]
    %v96 = vld [vmem:[#allocation9 + $0xe8] sm:$0xff]
    %v97 = vld [vmem:[#allocation9 + $0xf0] sm:$0xff]
    %v98 = vld [vmem:[#allocation9 + $0xf8] sm:$0xff]
    %v99 = vld [vmem:[#allocation9 + $0x100] sm:$0xff]
    %v100 = vld [vmem:[#allocation9 + $0x108] sm:$0xff]
    %v101 = vld [vmem:[#allocation9 + $0x110] sm:$0xff]
    %v102 = vld [vmem:[#allocation9 + $0x118] sm:$0xff]
    %v103 = vld [vmem:[#allocation9 + $0x120] sm:$0xff]
    %v104 = vld [vmem:[#allocation9 + $0x128] sm:$0xff]
    %v105 = vld [vmem:[#allocation9 + $0x130] sm:$0xff]
    %v106 = vld [vmem:[#allocation9 + $0x138] sm:$0xff]
    %v107 = vld [vmem:[#allocation9 + $0x140] sm:$0xff]
    %v108 = vld [vmem:[#allocation9 + $0x148] sm:$0xff]
    %v109 = vld [vmem:[#allocation9 + $0x150] sm:$0xff]
    %v110 = vld [vmem:[#allocation9 + $0x158] sm:$0xff]
    %v111 = vld [vmem:[#allocation9 + $0x160] sm:$0xff]
    %v112 = vld [vmem:[#allocation9 + $0x168] sm:$0xff]
    %v113 = vld [vmem:[#allocation9 + $0x170] sm:$0xff]
    %v114 = vld [vmem:[#allocation9 + $0x178] sm:$0xff]
    %v115 = vld [vmem:[#allocation9 + $0x180] sm:$0xff]
    %v116 = vld [vmem:[#allocation9 + $0x188] sm:$0xff]
    %v117 = vld [vmem:[#allocation9 + $0x190] sm:$0xff]
    %v118 = vld [vmem:[#allocation9 + $0x198] sm:$0xff]
    %v119 = vld [vmem:[#allocation9 + $0x1a0] sm:$0xff]
    %v120 = vld [vmem:[#allocation9 + $0x1a8] sm:$0xff]
    %v121 = vld [vmem:[#allocation9 + $0x1b0] sm:$0xff]
    %v122 = vld [vmem:[#allocation9 + $0x1b8] sm:$0xff]
    %v123 = vld [vmem:[#allocation9 + $0x1c0] sm:$0xff]
    %v124 = vld [vmem:[#allocation9 + $0x1c8] sm:$0xff]
    %v125 = vld [vmem:[#allocation9 + $0x1d0] sm:$0xff]
    %v126 = vld [vmem:[#allocation9 + $0x1d8] sm:$0xff]
    %v127 = vld [vmem:[#allocation9 + $0x1e0] sm:$0xff]
    %v128 = vld [vmem:[#allocation9 + $0x1e8] sm:$0xff]
    %v129 = vld [vmem:[#allocation9 + $0x1f0] sm:$0xff]
    %v130 = vld [vmem:[#allocation9 + $0x1f8] sm:$0xff]
    %v131 = vld [vmem:[%s2] sm:$0xf]
    %v133 = vlaneseq
    %v134 = vshrl.u32 %v133, 7
    %v135 = vsub.s32 0, %v134
    %v136 = vrot.slane %v131, %v135
    %v137 = vlaneseq
    %v138 = vshrl.u32 %v137, 7
    %v139 = vsub.s32 1, %v138
    %v140 = vrot.slane %v131, %v139
    %v141 = vlaneseq
    %v142 = vshrl.u32 %v141, 7
    %v143 = vsub.s32 2, %v142
    %v144 = vrot.slane %v131, %v143
    %v145 = vlaneseq
    %v146 = vshrl.u32 %v145, 7
    %v147 = vsub.s32 3, %v146
    %v148 = vrot.slane %v131, %v147
    %153 = vmatprep.subr.mxu0 %v68
    %154 = vmatpush1.msra.mxu0 %v67
    %155 = vmatprep.subr.mxu0 %v72
    %156 = vmatpush1.msra.mxu0 %v71
    %157 = vmatprep.subr.mxu0 %v76
    %158 = vmatpush1.msra.mxu0 %v75
    %159 = vmatprep.subr.mxu0 %v80
    %160 = vmatpush1.msra.mxu0 %v79
    %161 = vmatprep.subr.mxu0 %v84
    %162 = vmatpush1.msra.mxu0 %v83
    %163 = vmatprep.subr.mxu0 %v88
    %164 = vmatpush1.msra.mxu0 %v87
    %165 = vmatprep.subr.mxu0 %v92
    %166 = vmatpush1.msra.mxu0 %v91
    %167 = vmatprep.subr.mxu0 %v96
    %168 = vmatpush1.msra.mxu0 %v95
    %169 = vmatprep.subr.mxu0 %v100
    %170 = vmatpush1.msra.mxu0 %v99
    %171 = vmatprep.subr.mxu0 %v104
    %172 = vmatpush1.msra.mxu0 %v103
    %173 = vmatprep.subr.mxu0 %v108
    %174 = vmatpush1.msra.mxu0 %v107
    %175 = vmatprep.subr.mxu0 %v112
    %176 = vmatpush1.msra.mxu0 %v111
    %177 = vmatprep.subr.mxu0 %v116
    %178 = vmatpush1.msra.mxu0 %v115
    %179 = vmatprep.subr.mxu0 %v120
    %180 = vmatpush1.msra.mxu0 %v119
    %181 = vmatprep.subr.mxu0 %v124
    %182 = vmatpush1.msra.mxu0 %v123
    %183 = vmatprep.subr.mxu0 %v128
    %184 = vmatpush1.msra.mxu0 %v127
    %185 = vmatprep.subr.mxu0 0.0
    %186 = vmatpush1.msra.mxu0 0.0
    %187 = vmatprep.subr.mxu0 0.0
    %188 = vmatpush1.msra.mxu0 0.0
    %189 = vmatprep.subr.mxu0 0.0
    %190 = vmatpush1.msra.mxu0 0.0
    %191 = vmatprep.subr.mxu0 0.0
    %192 = vmatpush1.msra.mxu0 0.0
    %193 = vmatprep.subr.mxu0 0.0
    %194 = vmatpush1.msra.mxu0 0.0
    %195 = vmatprep.subr.mxu0 0.0
    %196 = vmatpush1.msra.mxu0 0.0
    %197 = vmatprep.subr.mxu0 0.0
    %198 = vmatpush1.msra.mxu0 0.0
    %199 = vmatprep.subr.mxu0 0.0
    %200 = vmatpush1.msra.mxu0 0.0
    %201 = vmatprep.subr.mxu0 0.0
    %202 = vmatpush1.msra.mxu0 0.0
    %203 = vmatprep.subr.mxu0 0.0
    %204 = vmatpush1.msra.mxu0 0.0
    %205 = vmatprep.subr.mxu0 0.0
    %206 = vmatpush1.msra.mxu0 0.0
    %207 = vmatprep.subr.mxu0 0.0
    %208 = vmatpush1.msra.mxu0 0.0
    %209 = vmatprep.subr.mxu0 0.0
    %210 = vmatpush1.msra.mxu0 0.0
    %211 = vmatprep.subr.mxu0 0.0
    %212 = vmatpush1.msra.mxu0 0.0
    %213 = vmatprep.subr.mxu0 0.0
    %214 = vmatpush1.msra.mxu0 0.0
    %215 = vmatprep.subr.mxu0 0.0
    %216 = vmatpush1.msra.mxu0 0.0
    %217 = vmatprep.mubr.f32.mxu0 0.0
    %218 = vmatmul.mubr.f32.gmra.mrb[0].mxu0 %v65
    %v219 = vpop.f32.mrb[0].mxu0
    %v220 = vadd.f32 %v136, %v219
    %v221 = vpop.f32.mrb[0].mxu0
    %v222 = vadd.f32 %v140, %v221
    %223 = vmatprep.mubr.f32.mxu0 0.0
    %224 = vmatmul.mubr.f32.gmra.mrb[0].mxu0 %v66
    %v225 = vpop.f32.mrb[0].mxu0
    %v226 = vadd.f32 %v136, %v225
    %v227 = vpop.f32.mrb[0].mxu0
    %v228 = vadd.f32 %v140, %v227
    %229 = vdwg.mxu0
    %230 = vmatprep.subr.mxu0 %v70
    %231 = vmatpush1.msra.mxu0 %v69
    %232 = vmatprep.subr.mxu0 %v74
    %233 = vmatpush1.msra.mxu0 %v73
    %234 = vmatprep.subr.mxu0 %v78
    %235 = vmatpush1.msra.mxu0 %v77
    %236 = vmatprep.subr.mxu0 %v82
    %237 = vmatpush1.msra.mxu0 %v81
    %238 = vmatprep.subr.mxu0 %v86
    %239 = vmatpush1.msra.mxu0 %v85
    %240 = vmatprep.subr.mxu0 %v90
    %241 = vmatpush1.msra.mxu0 %v89
    %242 = vmatprep.subr.mxu0 %v94
    %243 = vmatpush1.msra.mxu0 %v93
    %244 = vmatprep.subr.mxu0 %v98
    %245 = vmatpush1.msra.mxu0 %v97
    %246 = vmatprep.subr.mxu0 %v102
    %247 = vmatpush1.msra.mxu0 %v101
    %248 = vmatprep.subr.mxu0 %v106
    %249 = vmatpush1.msra.mxu0 %v105
    %250 = vmatprep.subr.mxu0 %v110
    %251 = vmatpush1.msra.mxu0 %v109
    %252 = vmatprep.subr.mxu0 %v114
    %253 = vmatpush1.msra.mxu0 %v113
    %254 = vmatprep.subr.mxu0 %v118
    %255 = vmatpush1.msra.mxu0 %v117
    %256 = vmatprep.subr.mxu0 %v122
    %257 = vmatpush1.msra.mxu0 %v121
    %258 = vmatprep.subr.mxu0 %v126
    %259 = vmatpush1.msra.mxu0 %v125
    %260 = vmatprep.subr.mxu0 %v130
    %261 = vmatpush1.msra.mxu0 %v129
    %262 = vmatprep.subr.mxu0 0.0
    %263 = vmatpush1.msra.mxu0 0.0
    %264 = vmatprep.subr.mxu0 0.0
    %265 = vmatpush1.msra.mxu0 0.0
    %266 = vmatprep.subr.mxu0 0.0
    %267 = vmatpush1.msra.mxu0 0.0
    %268 = vmatprep.subr.mxu0 0.0
    %269 = vmatpush1.msra.mxu0 0.0
    %270 = vmatprep.subr.mxu0 0.0
    %271 = vmatpush1.msra.mxu0 0.0
    %272 = vmatprep.subr.mxu0 0.0
    %273 = vmatpush1.msra.mxu0 0.0
    %274 = vmatprep.subr.mxu0 0.0
    %275 = vmatpush1.msra.mxu0 0.0
    %276 = vmatprep.subr.mxu0 0.0
    %277 = vmatpush1.msra.mxu0 0.0
    %278 = vmatprep.subr.mxu0 0.0
    %279 = vmatpush1.msra.mxu0 0.0
    %280 = vmatprep.subr.mxu0 0.0
    %281 = vmatpush1.msra.mxu0 0.0
    %282 = vmatprep.subr.mxu0 0.0
    %283 = vmatpush1.msra.mxu0 0.0
    %284 = vmatprep.subr.mxu0 0.0
    %285 = vmatpush1.msra.mxu0 0.0
    %286 = vmatprep.subr.mxu0 0.0
    %287 = vmatpush1.msra.mxu0 0.0
    %288 = vmatprep.subr.mxu0 0.0
    %289 = vmatpush1.msra.mxu0 0.0
    %290 = vmatprep.subr.mxu0 0.0
    %291 = vmatpush1.msra.mxu0 0.0
    %292 = vmatprep.subr.mxu0 0.0
    %293 = vmatpush1.msra.mxu0 0.0
    %294 = vmatprep.mubr.f32.mxu0 0.0
    %295 = vmatmul.mubr.f32.gmra.mrb[0].mxu0 %v65
    %v296 = vpop.f32.mrb[0].mxu0
    %v297 = vadd.f32 %v144, %v296
    %v298 = vpop.f32.mrb[0].mxu0
    %v299 = vadd.f32 %v148, %v298
    %300 = vmatprep.mubr.f32.mxu0 0.0
    %301 = vmatmul.mubr.f32.gmra.mrb[0].mxu0 %v66
    %v302 = vpop.f32.mrb[0].mxu0
    %v303 = vadd.f32 %v144, %v302
    %v304 = vpop.f32.mrb[0].mxu0
    %v305 = vadd.f32 %v148, %v304
    %306 = vdwg.mxu0
    %307 = vst [vmem:[#allocation4] sm:$0xff] %v220
    %308 = vst [vmem:[#allocation4 + $0x8] sm:$0xff] %v222
    %309 = vst [vmem:[#allocation4 + $0x10] sm:$0xff] %v297
    %310 = vst [vmem:[#allocation4 + $0x18] sm:$0xff] %v299
    %311 = vst [vmem:[#allocation4 + $0x20] sm:$0xff] %v226
    %312 = vst [vmem:[#allocation4 + $0x28] sm:$0xff] %v228
    %313 = vst [vmem:[#allocation4 + $0x30] sm:$0xff] %v303
    %314 = vst [vmem:[#allocation4 + $0x38] sm:$0xff] %v305
    %v315 = vld [vmem:[#allocation2] sm:$0x3]
    %v316 = vld [vmem:[#allocation3] sm:$0x3]
    %v317 = vld [vmem:[#allocation11] sm:$0xff]
    %v318 = vld [vmem:[#allocation11 + $0x8] sm:$0xff]
    %v319 = vld [vmem:[#allocation11 + $0x10] sm:$0xff]
    %v320 = vld [vmem:[#allocation11 + $0x18] sm:$0xff]
    %v321 = vld [vmem:[#allocation11 + $0x20] sm:$0xff]
    %v322 = vld [vmem:[#allocation11 + $0x28] sm:$0xff]
    %v323 = vld [vmem:[#allocation11 + $0x30] sm:$0xff]
    %v324 = vld [vmem:[#allocation11 + $0x38] sm:$0xff]
    %v325 = vld [vmem:[#allocation11 + $0x40] sm:$0xff]
    %v326 = vld [vmem:[#allocation11 + $0x48] sm:$0xff]
    %v327 = vld [vmem:[#allocation11 + $0x50] sm:$0xff]
    %v328 = vld [vmem:[#allocation11 + $0x58] sm:$0xff]
    %v329 = vld [vmem:[#allocation11 + $0x60] sm:$0xff]
    %v330 = vld [vmem:[#allocation11 + $0x68] sm:$0xff]
    %v331 = vld [vmem:[#allocation11 + $0x70] sm:$0xff]
    %v332 = vld [vmem:[#allocation11 + $0x78] sm:$0xff]
    %v333 = vld [vmem:[#allocation11 + $0x80] sm:$0xff]
    %v334 = vld [vmem:[#allocation11 + $0x88] sm:$0xff]
    %v335 = vld [vmem:[#allocation11 + $0x90] sm:$0xff]
    %v336 = vld [vmem:[#allocation11 + $0x98] sm:$0xff]
    %v337 = vld [vmem:[#allocation11 + $0xa0] sm:$0xff]
    %v338 = vld [vmem:[#allocation11 + $0xa8] sm:$0xff]
    %v339 = vld [vmem:[#allocation11 + $0xb0] sm:$0xff]
    %v340 = vld [vmem:[#allocation11 + $0xb8] sm:$0xff]
    %v341 = vld [vmem:[#allocation11 + $0xc0] sm:$0xff]
    %v342 = vld [vmem:[#allocation11 + $0xc8] sm:$0xff]
    %v343 = vld [vmem:[#allocation11 + $0xd0] sm:$0xff]
    %v344 = vld [vmem:[#allocation11 + $0xd8] sm:$0xff]
    %v345 = vld [vmem:[#allocation11 + $0xe0] sm:$0xff]
    %v346 = vld [vmem:[#allocation11 + $0xe8] sm:$0xff]
    %v347 = vld [vmem:[#allocation11 + $0xf0] sm:$0xff]
    %v348 = vld [vmem:[#allocation11 + $0xf8] sm:$0xff]
    %v349 = vld [vmem:[#allocation11 + $0x100] sm:$0xff]
    %v350 = vld [vmem:[#allocation11 + $0x108] sm:$0xff]
    %v351 = vld [vmem:[#allocation11 + $0x110] sm:$0xff]
    %v352 = vld [vmem:[#allocation11 + $0x118] sm:$0xff]
    %v353 = vld [vmem:[#allocation11 + $0x120] sm:$0xff]
    %v354 = vld [vmem:[#allocation11 + $0x128] sm:$0xff]
    %v355 = vld [vmem:[#allocation11 + $0x130] sm:$0xff]
    %v356 = vld [vmem:[#allocation11 + $0x138] sm:$0xff]
    %v357 = vld [vmem:[#allocation11 + $0x140] sm:$0xff]
    %v358 = vld [vmem:[#allocation11 + $0x148] sm:$0xff]
    %v359 = vld [vmem:[#allocation11 + $0x150] sm:$0xff]
    %v360 = vld [vmem:[#allocation11 + $0x158] sm:$0xff]
    %v361 = vld [vmem:[#allocation11 + $0x160] sm:$0xff]
    %v362 = vld [vmem:[#allocation11 + $0x168] sm:$0xff]
    %v363 = vld [vmem:[#allocation11 + $0x170] sm:$0xff]
    %v364 = vld [vmem:[#allocation11 + $0x178] sm:$0xff]
    %v365 = vld [vmem:[#allocation11 + $0x180] sm:$0xff]
    %v366 = vld [vmem:[#allocation11 + $0x188] sm:$0xff]
    %v367 = vld [vmem:[#allocation11 + $0x190] sm:$0xff]
    %v368 = vld [vmem:[#allocation11 + $0x198] sm:$0xff]
    %v369 = vld [vmem:[#allocation11 + $0x1a0] sm:$0xff]
    %v370 = vld [vmem:[#allocation11 + $0x1a8] sm:$0xff]
    %v371 = vld [vmem:[#allocation11 + $0x1b0] sm:$0xff]
    %v372 = vld [vmem:[#allocation11 + $0x1b8] sm:$0xff]
    %v373 = vld [vmem:[#allocation11 + $0x1c0] sm:$0xff]
    %v374 = vld [vmem:[#allocation11 + $0x1c8] sm:$0xff]
    %v375 = vld [vmem:[#allocation11 + $0x1d0] sm:$0xff]
    %v376 = vld [vmem:[#allocation11 + $0x1d8] sm:$0xff]
    %v377 = vld [vmem:[#allocation11 + $0x1e0] sm:$0xff]
    %v378 = vld [vmem:[#allocation11 + $0x1e8] sm:$0xff]
    %v379 = vld [vmem:[#allocation11 + $0x1f0] sm:$0xff]
    %v380 = vld [vmem:[#allocation11 + $0x1f8] sm:$0xff]
    %v381 = vld [vmem:[#allocation4] ss:$8 sm:$0xf]
    %s382 = scalar_lea.vmem [#allocation4], 32
    %v383 = vld [vmem:[%s382] ss:$8 sm:$0xf]
    %384 = vmatprep.subr.mxu0 %v318
    %385 = vmatpush1.msra.mxu0 %v317
    %386 = vmatprep.subr.mxu0 %v322
    %387 = vmatpush1.msra.mxu0 %v321
    %388 = vmatprep.subr.mxu0 %v326
    %389 = vmatpush1.msra.mxu0 %v325
    %390 = vmatprep.subr.mxu0 %v330
    %391 = vmatpush1.msra.mxu0 %v329
    %392 = vmatprep.subr.mxu0 %v334
    %393 = vmatpush1.msra.mxu0 %v333
    %394 = vmatprep.subr.mxu0 %v338
    %395 = vmatpush1.msra.mxu0 %v337
    %396 = vmatprep.subr.mxu0 %v342
    %397 = vmatpush1.msra.mxu0 %v341
    %398 = vmatprep.subr.mxu0 %v346
    %399 = vmatpush1.msra.mxu0 %v345
    %400 = vmatprep.subr.mxu0 %v350
    %401 = vmatpush1.msra.mxu0 %v349
    %402 = vmatprep.subr.mxu0 %v354
    %403 = vmatpush1.msra.mxu0 %v353
    %404 = vmatprep.subr.mxu0 %v358
    %405 = vmatpush1.msra.mxu0 %v357
    %406 = vmatprep.subr.mxu0 %v362
    %407 = vmatpush1.msra.mxu0 %v361
    %408 = vmatprep.subr.mxu0 %v366
    %409 = vmatpush1.msra.mxu0 %v365
    %410 = vmatprep.subr.mxu0 %v370
    %411 = vmatpush1.msra.mxu0 %v369
    %412 = vmatprep.subr.mxu0 %v374
    %413 = vmatpush1.msra.mxu0 %v373
    %414 = vmatprep.subr.mxu0 %v378
    %415 = vmatpush1.msra.mxu0 %v377
    %416 = vmatprep.subr.mxu0 0.0
    %417 = vmatpush1.msra.mxu0 0.0
    %418 = vmatprep.subr.mxu0 0.0
    %419 = vmatpush1.msra.mxu0 0.0
    %420 = vmatprep.subr.mxu0 0.0
    %421 = vmatpush1.msra.mxu0 0.0
    %422 = vmatprep.subr.mxu0 0.0
    %423 = vmatpush1.msra.mxu0 0.0
    %424 = vmatprep.subr.mxu0 0.0
    %425 = vmatpush1.msra.mxu0 0.0
    %426 = vmatprep.subr.mxu0 0.0
    %427 = vmatpush1.msra.mxu0 0.0
    %428 = vmatprep.subr.mxu0 0.0
    %429 = vmatpush1.msra.mxu0 0.0
    %430 = vmatprep.subr.mxu0 0.0
    %431 = vmatpush1.msra.mxu0 0.0
    %432 = vmatprep.subr.mxu0 0.0
    %433 = vmatpush1.msra.mxu0 0.0
    %434 = vmatprep.subr.mxu0 0.0
    %435 = vmatpush1.msra.mxu0 0.0
    %436 = vmatprep.subr.mxu0 0.0
    %437 = vmatpush1.msra.mxu0 0.0
    %438 = vmatprep.subr.mxu0 0.0
    %439 = vmatpush1.msra.mxu0 0.0
    %440 = vmatprep.subr.mxu0 0.0
    %441 = vmatpush1.msra.mxu0 0.0
    %442 = vmatprep.subr.mxu0 0.0
    %443 = vmatpush1.msra.mxu0 0.0
    %444 = vmatprep.subr.mxu0 0.0
    %445 = vmatpush1.msra.mxu0 0.0
    %446 = vmatprep.subr.mxu0 0.0
    %447 = vmatpush1.msra.mxu0 0.0
    %448 = vmatprep.mubr.f32.mxu0 0.0
    %449 = vmatmul.mubr.f32.gmra.mrb[0].mxu0 %v315
    %v450 = vpop.f32.mrb[0].mxu0
    %v451 = vadd.f32 0.0, %v450
    %v452 = vpop.f32.mrb[0].mxu0
    %v453 = vadd.f32 0.0, %v452
    %454 = vdwg.mxu0
    %455 = vmatprep.subr.mxu0 %v320
    %456 = vmatpush1.msra.mxu0 %v319
    %457 = vmatprep.subr.mxu0 %v324
    %458 = vmatpush1.msra.mxu0 %v323
    %459 = vmatprep.subr.mxu0 %v328
    %460 = vmatpush1.msra.mxu0 %v327
    %461 = vmatprep.subr.mxu0 %v332
    %462 = vmatpush1.msra.mxu0 %v331
    %463 = vmatprep.subr.mxu0 %v336
    %464 = vmatpush1.msra.mxu0 %v335
    %465 = vmatprep.subr.mxu0 %v340
    %466 = vmatpush1.msra.mxu0 %v339
    %467 = vmatprep.subr.mxu0 %v344
    %468 = vmatpush1.msra.mxu0 %v343
    %469 = vmatprep.subr.mxu0 %v348
    %470 = vmatpush1.msra.mxu0 %v347
    %471 = vmatprep.subr.mxu0 %v352
    %472 = vmatpush1.msra.mxu0 %v351
    %473 = vmatprep.subr.mxu0 %v356
    %474 = vmatpush1.msra.mxu0 %v355
    %475 = vmatprep.subr.mxu0 %v360
    %476 = vmatpush1.msra.mxu0 %v359
    %477 = vmatprep.subr.mxu0 %v364
    %478 = vmatpush1.msra.mxu0 %v363
    %479 = vmatprep.subr.mxu0 %v368
    %480 = vmatpush1.msra.mxu0 %v367
    %481 = vmatprep.subr.mxu0 %v372
    %482 = vmatpush1.msra.mxu0 %v371
    %483 = vmatprep.subr.mxu0 %v376
    %484 = vmatpush1.msra.mxu0 %v375
    %485 = vmatprep.subr.mxu0 %v380
    %486 = vmatpush1.msra.mxu0 %v379
    %487 = vmatprep.subr.mxu0 0.0
    %488 = vmatpush1.msra.mxu0 0.0
    %489 = vmatprep.subr.mxu0 0.0
    %490 = vmatpush1.msra.mxu0 0.0
    %491 = vmatprep.subr.mxu0 0.0
    %492 = vmatpush1.msra.mxu0 0.0
    %493 = vmatprep.subr.mxu0 0.0
    %494 = vmatpush1.msra.mxu0 0.0
    %495 = vmatprep.subr.mxu0 0.0
    %496 = vmatpush1.msra.mxu0 0.0
    %497 = vmatprep.subr.mxu0 0.0
    %498 = vmatpush1.msra.mxu0 0.0
    %499 = vmatprep.subr.mxu0 0.0
    %500 = vmatpush1.msra.mxu0 0.0
    %501 = vmatprep.subr.mxu0 0.0
    %502 = vmatpush1.msra.mxu0 0.0
    %503 = vmatprep.subr.mxu0 0.0
    %504 = vmatpush1.msra.mxu0 0.0
    %505 = vmatprep.subr.mxu0 0.0
    %506 = vmatpush1.msra.mxu0 0.0
    %507 = vmatprep.subr.mxu0 0.0
    %508 = vmatpush1.msra.mxu0 0.0
    %509 = vmatprep.subr.mxu0 0.0
    %510 = vmatpush1.msra.mxu0 0.0
    %511 = vmatprep.subr.mxu0 0.0
    %512 = vmatpush1.msra.mxu0 0.0
    %513 = vmatprep.subr.mxu0 0.0
    %514 = vmatpush1.msra.mxu0 0.0
    %515 = vmatprep.subr.mxu0 0.0
    %516 = vmatpush1.msra.mxu0 0.0
    %517 = vmatprep.subr.mxu0 0.0
    %518 = vmatpush1.msra.mxu0 0.0
    %519 = vmatprep.mubr.f32.mxu0 0.0
    %520 = vmatmul.mubr.f32.gmra.mrb[0].mxu0 %v315
    %v521 = vpop.f32.mrb[0].mxu0
    %v522 = vadd.f32 0.0, %v521
    %v523 = vpop.f32.mrb[0].mxu0
    %v524 = vadd.f32 0.0, %v523
    %525 = vdwg.mxu0
    %v530 = vcombine.low %v451, %v453
    %v531 = vcombine.low %v522, %v524
    %v533 = vunpack.c.l.s4 1966171168
    %v534 = vunpack.c.0.s8 %v533
    %v535 = vlaneseq
    %v536 = vshrl.u32 %v535, 7
    %v537 = vsub.s32 %v534, %v536
    %v538 = vrot.slane %v530, %v537
    %v540 = vunpack.c.l.s4 1966171168
    %v541 = vunpack.c.0.s8 %v540
    %v542 = vlaneseq
    %v543 = vshrl.u32 %v542, 7
    %v544 = vsub.s32 %v541, %v543
    %v545 = vrot.slane %v531, %v544
    %v546 = vcombine.low %v538, %v545
    %v547 = vcombine.high %v538, %v545
    %v549 = vunpack.c.l.s4 1966171168
    %v550 = vunpack.c.0.s8 %v549
    %v551 = vlaneseq
    %v552 = vshrl.u32 %v551, 7
    %v553 = vsub.s32 %v550, %v552
    %v554 = vrot.slane %v546, %v553
    %v556 = vunpack.c.l.s4 1966171168
    %v557 = vunpack.c.0.s8 %v556
    %v558 = vlaneseq
    %v559 = vshrl.u32 %v558, 7
    %v560 = vsub.s32 %v557, %v559
    %v561 = vrot.slane %v547, %v560
    %v564 = vadd.f32 %v381, %v554
    %v565 = vadd.f32 %v383, %v561
    %v566 = vxor.u32 %v564, 2147483648
    %v567 = vxor.u32 %v565, 2147483648
    %v568 = vmul.f32 %v566, 1.442695
    %v569 = vpow.pop %v568
    %v570 = vmul.f32 %v567, 1.442695
    %v571 = vpow.pop %v570
    %v572 = vadd.f32 %v569, 1.0
    %v573 = vadd.f32 %v571, 1.0
    %v574 = vrcp.pop %v572
    %v575 = vmul.f32 1.0, %v574
    %v576 = vrcp.pop %v573
    %v577 = vmul.f32 1.0, %v576
    %v580 = vrot.slane %v564, 1
    %v581 = vrot.slane %v565, 1
    %v584 = vxor.u32 %v580, 2147483648
    %v585 = vxor.u32 %v581, 2147483648
    %v586 = vmul.f32 %v584, 1.442695
    %v587 = vpow.pop %v586
    %v588 = vmul.f32 %v585, 1.442695
    %v589 = vpow.pop %v588
    %v590 = vadd.f32 %v587, 1.0
    %v591 = vadd.f32 %v589, 1.0
    %v592 = vrcp.pop %v590
    %v593 = vmul.f32 1.0, %v592
    %v594 = vrcp.pop %v591
    %v595 = vmul.f32 1.0, %v594
    %v596 = vrot.slane %v564, 2
    %v597 = vrot.slane %v565, 2
    %v600 = vtanh.pop %v596
    %v601 = vtanh.pop %v597
    %v602 = vrot.slane %v564, 3
    %v603 = vrot.slane %v565, 3
    %v606 = vxor.u32 %v602, 2147483648
    %v607 = vxor.u32 %v603, 2147483648
    %v608 = vmul.f32 %v606, 1.442695
    %v609 = vpow.pop %v608
    %v610 = vmul.f32 %v607, 1.442695
    %v611 = vpow.pop %v610
    %v612 = vadd.f32 %v609, 1.0
    %v613 = vadd.f32 %v611, 1.0
    %v614 = vrcp.pop %v612
    %v615 = vmul.f32 1.0, %v614
    %v616 = vrcp.pop %v613
    %v617 = vmul.f32 1.0, %v616
    %v620 = vunpack.c.l.s4 1966171168
    %v621 = vunpack.c.0.s8 %v620
    %v622 = vlaneseq
    %v623 = vshrl.u32 %v622, 7
    %v624 = vsub.s32 %v621, %v623
    %v625 = vrot.slane %v316, %v624
    %v626 = vcombine.high %v625, %v625
    %v628 = vunpack.c.l.s4 1966171168
    %v629 = vunpack.c.0.s8 %v628
    %v630 = vlaneseq
    %v631 = vshrl.u32 %v630, 7
    %v632 = vsub.s32 %v629, %v631
    %v633 = vrot.slane %v625, %v632
    %v635 = vunpack.c.l.s4 1966171168
    %v636 = vunpack.c.0.s8 %v635
    %v637 = vlaneseq
    %v638 = vshrl.u32 %v637, 7
    %v639 = vsub.s32 %v636, %v638
    %v640 = vrot.slane %v626, %v639
    %v643 = vmul.f32 %v593, %v633
    %v644 = vmul.f32 %v595, %v640
    %v645 = vmul.f32 %v575, %v600
    %v646 = vmul.f32 %v577, %v601
    %v647 = vadd.f32 %v643, %v645
    %v648 = vadd.f32 %v644, %v646
    %v649 = vtanh.pop %v647
    %v650 = vtanh.pop %v648
    %v651 = vmul.f32 %v615, %v649
    %v652 = vmul.f32 %v617, %v650
    %653 = vst [vmem:[#allocation5] sm:$0x1] %v651
    %654 = vst [vmem:[#allocation5 + $0x8] sm:$0x1] %v652
    %s655 = scalar_lea.vmem [#allocation4], 1
    %v656 = vld [vmem:[%s655] ss:$8 sm:$0xf]
    %s657 = scalar_lea.vmem [#allocation4], 33
    %v658 = vld [vmem:[%s657] ss:$8 sm:$0xf]
    %v661 = vcombine.low %v651, %v652
    %v663 = vunpack.c.l.s4 1966171168
    %v664 = vunpack.c.0.s8 %v663
    %v665 = vlaneseq
    %v666 = vshrl.u32 %v665, 7
    %v667 = vsub.s32 %v664, %v666
    %v668 = vrot.slane %v661, %v667
    %v670 = vunpack.c.l.s4 1966171168
    %v671 = vunpack.c.0.s8 %v670
    %v672 = vlaneseq
    %v673 = vshrl.u32 %v672, 7
    %v674 = vsub.s32 %v671, %v673
    %v675 = vrot.slane %v668, %v674
    %677 = vmatprep.subr.mxu0 %v318
    %678 = vmatpush1.msra.mxu0 %v317
    %679 = vmatprep.subr.mxu0 %v322
    %680 = vmatpush1.msra.mxu0 %v321
    %681 = vmatprep.subr.mxu0 %v326
    %682 = vmatpush1.msra.mxu0 %v325
    %683 = vmatprep.subr.mxu0 %v330
    %684 = vmatpush1.msra.mxu0 %v329
    %685 = vmatprep.subr.mxu0 %v334
    %686 = vmatpush1.msra.mxu0 %v333
    %687 = vmatprep.subr.mxu0 %v338
    %688 = vmatpush1.msra.mxu0 %v337
    %689 = vmatprep.subr.mxu0 %v342
    %690 = vmatpush1.msra.mxu0 %v341
    %691 = vmatprep.subr.mxu0 %v346
    %692 = vmatpush1.msra.mxu0 %v345
    %693 = vmatprep.subr.mxu0 %v350
    %694 = vmatpush1.msra.mxu0 %v349
    %695 = vmatprep.subr.mxu0 %v354
    %696 = vmatpush1.msra.mxu0 %v353
    %697 = vmatprep.subr.mxu0 %v358
    %698 = vmatpush1.msra.mxu0 %v357
    %699 = vmatprep.subr.mxu0 %v362
    %700 = vmatpush1.msra.mxu0 %v361
    %701 = vmatprep.subr.mxu0 %v366
    %702 = vmatpush1.msra.mxu0 %v365
    %703 = vmatprep.subr.mxu0 %v370
    %704 = vmatpush1.msra.mxu0 %v369
    %705 = vmatprep.subr.mxu0 %v374
    %706 = vmatpush1.msra.mxu0 %v373
    %707 = vmatprep.subr.mxu0 %v378
    %708 = vmatpush1.msra.mxu0 %v377
    %709 = vmatprep.subr.mxu0 0.0
    %710 = vmatpush1.msra.mxu0 0.0
    %711 = vmatprep.subr.mxu0 0.0
    %712 = vmatpush1.msra.mxu0 0.0
    %713 = vmatprep.subr.mxu0 0.0
    %714 = vmatpush1.msra.mxu0 0.0
    %715 = vmatprep.subr.mxu0 0.0
    %716 = vmatpush1.msra.mxu0 0.0
    %717 = vmatprep.subr.mxu0 0.0
    %718 = vmatpush1.msra.mxu0 0.0
    %719 = vmatprep.subr.mxu0 0.0
    %720 = vmatpush1.msra.mxu0 0.0
    %721 = vmatprep.subr.mxu0 0.0
    %722 = vmatpush1.msra.mxu0 0.0
    %723 = vmatprep.subr.mxu0 0.0
    %724 = vmatpush1.msra.mxu0 0.0
    %725 = vmatprep.subr.mxu0 0.0
    %726 = vmatpush1.msra.mxu0 0.0
    %727 = vmatprep.subr.mxu0 0.0
    %728 = vmatpush1.msra.mxu0 0.0
    %729 = vmatprep.subr.mxu0 0.0
    %730 = vmatpush1.msra.mxu0 0.0
    %731 = vmatprep.subr.mxu0 0.0
    %732 = vmatpush1.msra.mxu0 0.0
    %733 = vmatprep.subr.mxu0 0.0
    %734 = vmatpush1.msra.mxu0 0.0
    %735 = vmatprep.subr.mxu0 0.0
    %736 = vmatpush1.msra.mxu0 0.0
    %737 = vmatprep.subr.mxu0 0.0
    %738 = vmatpush1.msra.mxu0 0.0
    %739 = vmatprep.subr.mxu0 0.0
    %740 = vmatpush1.msra.mxu0 0.0
    %741 = vmatprep.mubr.f32.mxu0 0.0
    %742 = vmatmul.mubr.f32.gmra.mrb[0].mxu0 %v675
    %v743 = vpop.f32.mrb[0].mxu0
    %v744 = vadd.f32 0.0, %v743
    %v745 = vpop.f32.mrb[0].mxu0
    %v746 = vadd.f32 0.0, %v745
    %747 = vdwg.mxu0
    %748 = vmatprep.subr.mxu0 %v320
    %749 = vmatpush1.msra.mxu0 %v319
    %750 = vmatprep.subr.mxu0 %v324
    %751 = vmatpush1.msra.mxu0 %v323
    %752 = vmatprep.subr.mxu0 %v328
    %753 = vmatpush1.msra.mxu0 %v327
    %754 = vmatprep.subr.mxu0 %v332
    %755 = vmatpush1.msra.mxu0 %v331
    %756 = vmatprep.subr.mxu0 %v336
    %757 = vmatpush1.msra.mxu0 %v335
    %758 = vmatprep.subr.mxu0 %v340
    %759 = vmatpush1.msra.mxu0 %v339
    %760 = vmatprep.subr.mxu0 %v344
    %761 = vmatpush1.msra.mxu0 %v343
    %762 = vmatprep.subr.mxu0 %v348
    %763 = vmatpush1.msra.mxu0 %v347
    %764 = vmatprep.subr.mxu0 %v352
    %765 = vmatpush1.msra.mxu0 %v351
    %766 = vmatprep.subr.mxu0 %v356
    %767 = vmatpush1.msra.mxu0 %v355
    %768 = vmatprep.subr.mxu0 %v360
    %769 = vmatpush1.msra.mxu0 %v359
    %770 = vmatprep.subr.mxu0 %v364
    %771 = vmatpush1.msra.mxu0 %v363
    %772 = vmatprep.subr.mxu0 %v368
    %773 = vmatpush1.msra.mxu0 %v367
    %774 = vmatprep.subr.mxu0 %v372
    %775 = vmatpush1.msra.mxu0 %v371
    %776 = vmatprep.subr.mxu0 %v376
    %777 = vmatpush1.msra.mxu0 %v375
    %778 = vmatprep.subr.mxu0 %v380
    %779 = vmatpush1.msra.mxu0 %v379
    %780 = vmatprep.subr.mxu0 0.0
    %781 = vmatpush1.msra.mxu0 0.0
    %782 = vmatprep.subr.mxu0 0.0
    %783 = vmatpush1.msra.mxu0 0.0
    %784 = vmatprep.subr.mxu0 0.0
    %785 = vmatpush1.msra.mxu0 0.0
    %786 = vmatprep.subr.mxu0 0.0
    %787 = vmatpush1.msra.mxu0 0.0
    %788 = vmatprep.subr.mxu0 0.0
    %789 = vmatpush1.msra.mxu0 0.0
    %790 = vmatprep.subr.mxu0 0.0
    %791 = vmatpush1.msra.mxu0 0.0
    %792 = vmatprep.subr.mxu0 0.0
    %793 = vmatpush1.msra.mxu0 0.0
    %794 = vmatprep.subr.mxu0 0.0
    %795 = vmatpush1.msra.mxu0 0.0
    %796 = vmatprep.subr.mxu0 0.0
    %797 = vmatpush1.msra.mxu0 0.0
    %798 = vmatprep.subr.mxu0 0.0
    %799 = vmatpush1.msra.mxu0 0.0
    %800 = vmatprep.subr.mxu0 0.0
    %801 = vmatpush1.msra.mxu0 0.0
    %802 = vmatprep.subr.mxu0 0.0
    %803 = vmatpush1.msra.mxu0 0.0
    %804 = vmatprep.subr.mxu0 0.0
    %805 = vmatpush1.msra.mxu0 0.0
    %806 = vmatprep.subr.mxu0 0.0
    %807 = vmatpush1.msra.mxu0 0.0
    %808 = vmatprep.subr.mxu0 0.0
    %809 = vmatpush1.msra.mxu0 0.0
    %810 = vmatprep.subr.mxu0 0.0
    %811 = vmatpush1.msra.mxu0 0.0
    %812 = vmatprep.mubr.f32.mxu0 0.0
    %813 = vmatmul.mubr.f32.gmra.mrb[0].mxu0 %v675
    %v814 = vpop.f32.mrb[0].mxu0
    %v815 = vadd.f32 0.0, %v814
    %v816 = vpop.f32.mrb[0].mxu0
    %v817 = vadd.f32 0.0, %v816
    %818 = vdwg.mxu0
    %v823 = vcombine.low %v744, %v746
    %v824 = vcombine.low %v815, %v817
    %v826 = vunpack.c.l.s4 1966171168
    %v827 = vunpack.c.0.s8 %v826
    %v828 = vlaneseq
    %v829 = vshrl.u32 %v828, 7
    %v830 = vsub.s32 %v827, %v829
    %v831 = vrot.slane %v823, %v830
    %v833 = vunpack.c.l.s4 1966171168
    %v834 = vunpack.c.0.s8 %v833
    %v835 = vlaneseq
    %v836 = vshrl.u32 %v835, 7
    %v837 = vsub.s32 %v834, %v836
    %v838 = vrot.slane %v824, %v837
    %v839 = vcombine.low %v831, %v838
    %v840 = vcombine.high %v831, %v838
    %v842 = vunpack.c.l.s4 1966171168
    %v843 = vunpack.c.0.s8 %v842
    %v844 = vlaneseq
    %v845 = vshrl.u32 %v844, 7
    %v846 = vsub.s32 %v843, %v845
    %v847 = vrot.slane %v839, %v846
    %v849 = vunpack.c.l.s4 1966171168
    %v850 = vunpack.c.0.s8 %v849
    %v851 = vlaneseq
    %v852 = vshrl.u32 %v851, 7
    %v853 = vsub.s32 %v850, %v852
    %v854 = vrot.slane %v840, %v853
    %v857 = vadd.f32 %v656, %v847
    %v858 = vadd.f32 %v658, %v854
    %v859 = vxor.u32 %v857, 2147483648
    %v860 = vxor.u32 %v858, 2147483648
    %v861 = vmul.f32 %v859, 1.442695
    %v862 = vpow.pop %v861
    %v863 = vmul.f32 %v860, 1.442695
    %v864 = vpow.pop %v863
    %v865 = vadd.f32 %v862, 1.0
    %v866 = vadd.f32 %v864, 1.0
    %v867 = vrcp.pop %v865
    %v868 = vmul.f32 1.0, %v867
    %v869 = vrcp.pop %v866
    %v870 = vmul.f32 1.0, %v869
    %v873 = vrot.slane %v857, 1
    %v874 = vrot.slane %v858, 1
    %v877 = vxor.u32 %v873, 2147483648
    %v878 = vxor.u32 %v874, 2147483648
    %v879 = vmul.f32 %v877, 1.442695
    %v880 = vpow.pop %v879
    %v881 = vmul.f32 %v878, 1.442695
    %v882 = vpow.pop %v881
    %v883 = vadd.f32 %v880, 1.0
    %v884 = vadd.f32 %v882, 1.0
    %v885 = vrcp.pop %v883
    %v886 = vmul.f32 1.0, %v885
    %v887 = vrcp.pop %v884
    %v888 = vmul.f32 1.0, %v887
    %v889 = vrot.slane %v857, 2
    %v890 = vrot.slane %v858, 2
    %v893 = vtanh.pop %v889
    %v894 = vtanh.pop %v890
    %v895 = vrot.slane %v857, 3
    %v896 = vrot.slane %v858, 3
    %v899 = vxor.u32 %v895, 2147483648
    %v900 = vxor.u32 %v896, 2147483648
    %v901 = vmul.f32 %v899, 1.442695
    %v902 = vpow.pop %v901
    %v903 = vmul.f32 %v900, 1.442695
    %v904 = vpow.pop %v903
    %v905 = vadd.f32 %v902, 1.0
    %v906 = vadd.f32 %v904, 1.0
    %v907 = vrcp.pop %v905
    %v908 = vmul.f32 1.0, %v907
    %v909 = vrcp.pop %v906
    %v910 = vmul.f32 1.0, %v909
    %v911 = vmul.f32 %v886, %v647
    %v912 = vmul.f32 %v888, %v648
    %v913 = vmul.f32 %v868, %v893
    %v914 = vmul.f32 %v870, %v894
    %v915 = vadd.f32 %v911, %v913
    %v916 = vadd.f32 %v912, %v914
    %v917 = vtanh.pop %v915
    %v918 = vtanh.pop %v916
    %v919 = vmul.f32 %v908, %v917
    %v920 = vmul.f32 %v910, %v918
    %921 = vst [vmem:[#allocation5 + $0x1] sm:$0x1] %v919
    %922 = vst [vmem:[#allocation5 + $0x9] sm:$0x1] %v920
    %s923 = scalar_lea.vmem [#allocation4], 2
    %v924 = vld [vmem:[%s923] ss:$8 sm:$0xf]
    %s925 = scalar_lea.vmem [#allocation4], 34
    %v926 = vld [vmem:[%s925] ss:$8 sm:$0xf]
    %v929 = vcombine.low %v919, %v920
    %v931 = vunpack.c.l.s4 1966171168
    %v932 = vunpack.c.0.s8 %v931
    %v933 = vlaneseq
    %v934 = vshrl.u32 %v933, 7
    %v935 = vsub.s32 %v932, %v934
    %v936 = vrot.slane %v929, %v935
    %v938 = vunpack.c.l.s4 1966171168
    %v939 = vunpack.c.0.s8 %v938
    %v940 = vlaneseq
    %v941 = vshrl.u32 %v940, 7
    %v942 = vsub.s32 %v939, %v941
    %v943 = vrot.slane %v936, %v942
    %945 = vmatprep.subr.mxu0 %v318
    %946 = vmatpush1.msra.mxu0 %v317
    %947 = vmatprep.subr.mxu0 %v322
    %948 = vmatpush1.msra.mxu0 %v321
    %949 = vmatprep.subr.mxu0 %v326
    %950 = vmatpush1.msra.mxu0 %v325
    %951 = vmatprep.subr.mxu0 %v330
    %952 = vmatpush1.msra.mxu0 %v329
    %953 = vmatprep.subr.mxu0 %v334
    %954 = vmatpush1.msra.mxu0 %v333
    %955 = vmatprep.subr.mxu0 %v338
    %956 = vmatpush1.msra.mxu0 %v337
    %957 = vmatprep.subr.mxu0 %v342
    %958 = vmatpush1.msra.mxu0 %v341
    %959 = vmatprep.subr.mxu0 %v346
    %960 = vmatpush1.msra.mxu0 %v345
    %961 = vmatprep.subr.mxu0 %v350
    %962 = vmatpush1.msra.mxu0 %v349
    %963 = vmatprep.subr.mxu0 %v354
    %964 = vmatpush1.msra.mxu0 %v353
    %965 = vmatprep.subr.mxu0 %v358
    %966 = vmatpush1.msra.mxu0 %v357
    %967 = vmatprep.subr.mxu0 %v362
    %968 = vmatpush1.msra.mxu0 %v361
    %969 = vmatprep.subr.mxu0 %v366
    %970 = vmatpush1.msra.mxu0 %v365
    %971 = vmatprep.subr.mxu0 %v370
    %972 = vmatpush1.msra.mxu0 %v369
    %973 = vmatprep.subr.mxu0 %v374
    %974 = vmatpush1.msra.mxu0 %v373
    %975 = vmatprep.subr.mxu0 %v378
    %976 = vmatpush1.msra.mxu0 %v377
    %977 = vmatprep.subr.mxu0 0.0
    %978 = vmatpush1.msra.mxu0 0.0
    %979 = vmatprep.subr.mxu0 0.0
    %980 = vmatpush1.msra.mxu0 0.0
    %981 = vmatprep.subr.mxu0 0.0
    %982 = vmatpush1.msra.mxu0 0.0
    %983 = vmatprep.subr.mxu0 0.0
    %984 = vmatpush1.msra.mxu0 0.0
    %985 = vmatprep.subr.mxu0 0.0
    %986 = vmatpush1.msra.mxu0 0.0
    %987 = vmatprep.subr.mxu0 0.0
    %988 = vmatpush1.msra.mxu0 0.0
    %989 = vmatprep.subr.mxu0 0.0
    %990 = vmatpush1.msra.mxu0 0.0
    %991 = vmatprep.subr.mxu0 0.0
    %992 = vmatpush1.msra.mxu0 0.0
    %993 = vmatprep.subr.mxu0 0.0
    %994 = vmatpush1.msra.mxu0 0.0
    %995 = vmatprep.subr.mxu0 0.0
    %996 = vmatpush1.msra.mxu0 0.0
    %997 = vmatprep.subr.mxu0 0.0
    %998 = vmatpush1.msra.mxu0 0.0
    %999 = vmatprep.subr.mxu0 0.0
    %1000 = vmatpush1.msra.mxu0 0.0
    %1001 = vmatprep.subr.mxu0 0.0
    %1002 = vmatpush1.msra.mxu0 0.0
    %1003 = vmatprep.subr.mxu0 0.0
    %1004 = vmatpush1.msra.mxu0 0.0
    %1005 = vmatprep.subr.mxu0 0.0
    %1006 = vmatpush1.msra.mxu0 0.0
    %1007 = vmatprep.subr.mxu0 0.0
    %1008 = vmatpush1.msra.mxu0 0.0
    %1009 = vmatprep.mubr.f32.mxu0 0.0
    %1010 = vmatmul.mubr.f32.gmra.mrb[0].mxu0 %v943
    %v1011 = vpop.f32.mrb[0].mxu0
    %v1012 = vadd.f32 0.0, %v1011
    %v1013 = vpop.f32.mrb[0].mxu0
    %v1014 = vadd.f32 0.0, %v1013
    %1015 = vdwg.mxu0
    %1016 = vmatprep.subr.mxu0 %v320
    %1017 = vmatpush1.msra.mxu0 %v319
    %1018 = vmatprep.subr.mxu0 %v324
    %1019 = vmatpush1.msra.mxu0 %v323
    %1020 = vmatprep.subr.mxu0 %v328
    %1021 = vmatpush1.msra.mxu0 %v327
    %1022 = vmatprep.subr.mxu0 %v332
    %1023 = vmatpush1.msra.mxu0 %v331
    %1024 = vmatprep.subr.mxu0 %v336
    %1025 = vmatpush1.msra.mxu0 %v335
    %1026 = vmatprep.subr.mxu0 %v340
    %1027 = vmatpush1.msra.mxu0 %v339
    %1028 = vmatprep.subr.mxu0 %v344
    %1029 = vmatpush1.msra.mxu0 %v343
    %1030 = vmatprep.subr.mxu0 %v348
    %1031 = vmatpush1.msra.mxu0 %v347
    %1032 = vmatprep.subr.mxu0 %v352
    %1033 = vmatpush1.msra.mxu0 %v351
    %1034 = vmatprep.subr.mxu0 %v356
    %1035 = vmatpush1.msra.mxu0 %v355
    %1036 = vmatprep.subr.mxu0 %v360
    %1037 = vmatpush1.msra.mxu0 %v359
    %1038 = vmatprep.subr.mxu0 %v364
    %1039 = vmatpush1.msra.mxu0 %v363
    %1040 = vmatprep.subr.mxu0 %v368
    %1041 = vmatpush1.msra.mxu0 %v367
    %1042 = vmatprep.subr.mxu0 %v372
    %1043 = vmatpush1.msra.mxu0 %v371
    %1044 = vmatprep.subr.mxu0 %v376
    %1045 = vmatpush1.msra.mxu0 %v375
    %1046 = vmatprep.subr.mxu0 %v380
    %1047 = vmatpush1.msra.mxu0 %v379
    %1048 = vmatprep.subr.mxu0 0.0
    %1049 = vmatpush1.msra.mxu0 0.0
    %1050 = vmatprep.subr.mxu0 0.0
    %1051 = vmatpush1.msra.mxu0 0.0
    %1052 = vmatprep.subr.mxu0 0.0
    %1053 = vmatpush1.msra.mxu0 0.0
    %1054 = vmatprep.subr.mxu0 0.0
    %1055 = vmatpush1.msra.mxu0 0.0
    %1056 = vmatprep.subr.mxu0 0.0
    %1057 = vmatpush1.msra.mxu0 0.0
    %1058 = vmatprep.subr.mxu0 0.0
    %1059 = vmatpush1.msra.mxu0 0.0
    %1060 = vmatprep.subr.mxu0 0.0
    %1061 = vmatpush1.msra.mxu0 0.0
    %1062 = vmatprep.subr.mxu0 0.0
    %1063 = vmatpush1.msra.mxu0 0.0
    %1064 = vmatprep.subr.mxu0 0.0
    %1065 = vmatpush1.msra.mxu0 0.0
    %1066 = vmatprep.subr.mxu0 0.0
    %1067 = vmatpush1.msra.mxu0 0.0
    %1068 = vmatprep.subr.mxu0 0.0
    %1069 = vmatpush1.msra.mxu0 0.0
    %1070 = vmatprep.subr.mxu0 0.0
    %1071 = vmatpush1.msra.mxu0 0.0
    %1072 = vmatprep.subr.mxu0 0.0
    %1073 = vmatpush1.msra.mxu0 0.0
    %1074 = vmatprep.subr.mxu0 0.0
    %1075 = vmatpush1.msra.mxu0 0.0
    %1076 = vmatprep.subr.mxu0 0.0
    %1077 = vmatpush1.msra.mxu0 0.0
    %1078 = vmatprep.subr.mxu0 0.0
    %1079 = vmatpush1.msra.mxu0 0.0
    %1080 = vmatprep.mubr.f32.mxu0 0.0
    %1081 = vmatmul.mubr.f32.gmra.mrb[0].mxu0 %v943
    %v1082 = vpop.f32.mrb[0].mxu0
    %v1083 = vadd.f32 0.0, %v1082
    %v1084 = vpop.f32.mrb[0].mxu0
    %v1085 = vadd.f32 0.0, %v1084
    %1086 = vdwg.mxu0
    %v1091 = vcombine.low %v1012, %v1014
    %v1092 = vcombine.low %v1083, %v1085
    %v1094 = vunpack.c.l.s4 1966171168
    %v1095 = vunpack.c.0.s8 %v1094
    %v1096 = vlaneseq
    %v1097 = vshrl.u32 %v1096, 7
    %v1098 = vsub.s32 %v1095, %v1097
    %v1099 = vrot.slane %v1091, %v1098
    %v1101 = vunpack.c.l.s4 1966171168
    %v1102 = vunpack.c.0.s8 %v1101
    %v1103 = vlaneseq
    %v1104 = vshrl.u32 %v1103, 7
    %v1105 = vsub.s32 %v1102, %v1104
    %v1106 = vrot.slane %v1092, %v1105
    %v1107 = vcombine.low %v1099, %v1106
    %v1108 = vcombine.high %v1099, %v1106
    %v1110 = vunpack.c.l.s4 1966171168
    %v1111 = vunpack.c.0.s8 %v1110
    %v1112 = vlaneseq
    %v1113 = vshrl.u32 %v1112, 7
    %v1114 = vsub.s32 %v1111, %v1113
    %v1115 = vrot.slane %v1107, %v1114
    %v1117 = vunpack.c.l.s4 1966171168
    %v1118 = vunpack.c.0.s8 %v1117
    %v1119 = vlaneseq
    %v1120 = vshrl.u32 %v1119, 7
    %v1121 = vsub.s32 %v1118, %v1120
    %v1122 = vrot.slane %v1108, %v1121
    %v1125 = vadd.f32 %v924, %v1115
    %v1126 = vadd.f32 %v926, %v1122
    %v1127 = vxor.u32 %v1125, 2147483648
    %v1128 = vxor.u32 %v1126, 2147483648
    %v1129 = vmul.f32 %v1127, 1.442695
    %v1130 = vpow.pop %v1129
    %v1131 = vmul.f32 %v1128, 1.442695
    %v1132 = vpow.pop %v1131
    %v1133 = vadd.f32 %v1130, 1.0
    %v1134 = vadd.f32 %v1132, 1.0
    %v1135 = vrcp.pop %v1133
    %v1136 = vmul.f32 1.0, %v1135
    %v1137 = vrcp.pop %v1134
    %v1138 = vmul.f32 1.0, %v1137
    %v1141 = vrot.slane %v1125, 1
    %v1142 = vrot.slane %v1126, 1
    %v1145 = vxor.u32 %v1141, 2147483648
    %v1146 = vxor.u32 %v1142, 2147483648
    %v1147 = vmul.f32 %v1145, 1.442695
    %v1148 = vpow.pop %v1147
    %v1149 = vmul.f32 %v1146, 1.442695
    %v1150 = vpow.pop %v1149
    %v1151 = vadd.f32 %v1148, 1.0
    %v1152 = vadd.f32 %v1150, 1.0
    %v1153 = vrcp.pop %v1151
    %v1154 = vmul.f32 1.0, %v1153
    %v1155 = vrcp.pop %v1152
    %v1156 = vmul.f32 1.0, %v1155
    %v1157 = vrot.slane %v1125, 2
    %v1158 = vrot.slane %v1126, 2
    %v1161 = vtanh.pop %v1157
    %v1162 = vtanh.pop %v1158
    %v1163 = vrot.slane %v1125, 3
    %v1164 = vrot.slane %v1126, 3
    %v1167 = vxor.u32 %v1163, 2147483648
    %v1168 = vxor.u32 %v1164, 2147483648
    %v1169 = vmul.f32 %v1167, 1.442695
    %v1170 = vpow.pop %v1169
    %v1171 = vmul.f32 %v1168, 1.442695
    %v1172 = vpow.pop %v1171
    %v1173 = vadd.f32 %v1170, 1.0
    %v1174 = vadd.f32 %v1172, 1.0
    %v1175 = vrcp.pop %v1173
    %v1176 = vmul.f32 1.0, %v1175
    %v1177 = vrcp.pop %v1174
    %v1178 = vmul.f32 1.0, %v1177
    %v1179 = vmul.f32 %v1154, %v915
    %v1180 = vmul.f32 %v1156, %v916
    %v1181 = vmul.f32 %v1136, %v1161
    %v1182 = vmul.f32 %v1138, %v1162
    %v1183 = vadd.f32 %v1179, %v1181
    %v1184 = vadd.f32 %v1180, %v1182
    %v1185 = vtanh.pop %v1183
    %v1186 = vtanh.pop %v1184
    %v1187 = vmul.f32 %v1176, %v1185
    %v1188 = vmul.f32 %v1178, %v1186
    %1189 = vst [vmem:[#allocation5 + $0x2] sm:$0x1] %v1187
    %1190 = vst [vmem:[#allocation5 + $0xa] sm:$0x1] %v1188
    %s1191 = scalar_lea.vmem [#allocation4], 3
    %v1192 = vld [vmem:[%s1191] ss:$8 sm:$0xf]
    %s1193 = scalar_lea.vmem [#allocation4], 35
    %v1194 = vld [vmem:[%s1193] ss:$8 sm:$0xf]
    %v1197 = vcombine.low %v1187, %v1188
    %v1199 = vunpack.c.l.s4 1966171168
    %v1200 = vunpack.c.0.s8 %v1199
    %v1201 = vlaneseq
    %v1202 = vshrl.u32 %v1201, 7
    %v1203 = vsub.s32 %v1200, %v1202
    %v1204 = vrot.slane %v1197, %v1203
    %v1206 = vunpack.c.l.s4 1966171168
    %v1207 = vunpack.c.0.s8 %v1206
    %v1208 = vlaneseq
    %v1209 = vshrl.u32 %v1208, 7
    %v1210 = vsub.s32 %v1207, %v1209
    %v1211 = vrot.slane %v1204, %v1210
    %1213 = vmatprep.subr.mxu0 %v318
    %1214 = vmatpush1.msra.mxu0 %v317
    %1215 = vmatprep.subr.mxu0 %v322
    %1216 = vmatpush1.msra.mxu0 %v321
    %1217 = vmatprep.subr.mxu0 %v326
    %1218 = vmatpush1.msra.mxu0 %v325
    %1219 = vmatprep.subr.mxu0 %v330
    %1220 = vmatpush1.msra.mxu0 %v329
    %1221 = vmatprep.subr.mxu0 %v334
    %1222 = vmatpush1.msra.mxu0 %v333
    %1223 = vmatprep.subr.mxu0 %v338
    %1224 = vmatpush1.msra.mxu0 %v337
    %1225 = vmatprep.subr.mxu0 %v342
    %1226 = vmatpush1.msra.mxu0 %v341
    %1227 = vmatprep.subr.mxu0 %v346
    %1228 = vmatpush1.msra.mxu0 %v345
    %1229 = vmatprep.subr.mxu0 %v350
    %1230 = vmatpush1.msra.mxu0 %v349
    %1231 = vmatprep.subr.mxu0 %v354
    %1232 = vmatpush1.msra.mxu0 %v353
    %1233 = vmatprep.subr.mxu0 %v358
    %1234 = vmatpush1.msra.mxu0 %v357
    %1235 = vmatprep.subr.mxu0 %v362
    %1236 = vmatpush1.msra.mxu0 %v361
    %1237 = vmatprep.subr.mxu0 %v366
    %1238 = vmatpush1.msra.mxu0 %v365
    %1239 = vmatprep.subr.mxu0 %v370
    %1240 = vmatpush1.msra.mxu0 %v369
    %1241 = vmatprep.subr.mxu0 %v374
    %1242 = vmatpush1.msra.mxu0 %v373
    %1243 = vmatprep.subr.mxu0 %v378
    %1244 = vmatpush1.msra.mxu0 %v377
    %1245 = vmatprep.subr.mxu0 0.0
    %1246 = vmatpush1.msra.mxu0 0.0
    %1247 = vmatprep.subr.mxu0 0.0
    %1248 = vmatpush1.msra.mxu0 0.0
    %1249 = vmatprep.subr.mxu0 0.0
    %1250 = vmatpush1.msra.mxu0 0.0
    %1251 = vmatprep.subr.mxu0 0.0
    %1252 = vmatpush1.msra.mxu0 0.0
    %1253 = vmatprep.subr.mxu0 0.0
    %1254 = vmatpush1.msra.mxu0 0.0
    %1255 = vmatprep.subr.mxu0 0.0
    %1256 = vmatpush1.msra.mxu0 0.0
    %1257 = vmatprep.subr.mxu0 0.0
    %1258 = vmatpush1.msra.mxu0 0.0
    %1259 = vmatprep.subr.mxu0 0.0
    %1260 = vmatpush1.msra.mxu0 0.0
    %1261 = vmatprep.subr.mxu0 0.0
    %1262 = vmatpush1.msra.mxu0 0.0
    %1263 = vmatprep.subr.mxu0 0.0
    %1264 = vmatpush1.msra.mxu0 0.0
    %1265 = vmatprep.subr.mxu0 0.0
    %1266 = vmatpush1.msra.mxu0 0.0
    %1267 = vmatprep.subr.mxu0 0.0
    %1268 = vmatpush1.msra.mxu0 0.0
    %1269 = vmatprep.subr.mxu0 0.0
    %1270 = vmatpush1.msra.mxu0 0.0
    %1271 = vmatprep.subr.mxu0 0.0
    %1272 = vmatpush1.msra.mxu0 0.0
    %1273 = vmatprep.subr.mxu0 0.0
    %1274 = vmatpush1.msra.mxu0 0.0
    %1275 = vmatprep.subr.mxu0 0.0
    %1276 = vmatpush1.msra.mxu0 0.0
    %1277 = vmatprep.mubr.f32.mxu0 0.0
    %1278 = vmatmul.mubr.f32.gmra.mrb[0].mxu0 %v1211
    %v1279 = vpop.f32.mrb[0].mxu0
    %v1280 = vadd.f32 0.0, %v1279
    %v1281 = vpop.f32.mrb[0].mxu0
    %v1282 = vadd.f32 0.0, %v1281
    %1283 = vdwg.mxu0
    %1284 = vmatprep.subr.mxu0 %v320
    %1285 = vmatpush1.msra.mxu0 %v319
    %1286 = vmatprep.subr.mxu0 %v324
    %1287 = vmatpush1.msra.mxu0 %v323
    %1288 = vmatprep.subr.mxu0 %v328
    %1289 = vmatpush1.msra.mxu0 %v327
    %1290 = vmatprep.subr.mxu0 %v332
    %1291 = vmatpush1.msra.mxu0 %v331
    %1292 = vmatprep.subr.mxu0 %v336
    %1293 = vmatpush1.msra.mxu0 %v335
    %1294 = vmatprep.subr.mxu0 %v340
    %1295 = vmatpush1.msra.mxu0 %v339
    %1296 = vmatprep.subr.mxu0 %v344
    %1297 = vmatpush1.msra.mxu0 %v343
    %1298 = vmatprep.subr.mxu0 %v348
    %1299 = vmatpush1.msra.mxu0 %v347
    %1300 = vmatprep.subr.mxu0 %v352
    %1301 = vmatpush1.msra.mxu0 %v351
    %1302 = vmatprep.subr.mxu0 %v356
    %1303 = vmatpush1.msra.mxu0 %v355
    %1304 = vmatprep.subr.mxu0 %v360
    %1305 = vmatpush1.msra.mxu0 %v359
    %1306 = vmatprep.subr.mxu0 %v364
    %1307 = vmatpush1.msra.mxu0 %v363
    %1308 = vmatprep.subr.mxu0 %v368
    %1309 = vmatpush1.msra.mxu0 %v367
    %1310 = vmatprep.subr.mxu0 %v372
    %1311 = vmatpush1.msra.mxu0 %v371
    %1312 = vmatprep.subr.mxu0 %v376
    %1313 = vmatpush1.msra.mxu0 %v375
    %1314 = vmatprep.subr.mxu0 %v380
    %1315 = vmatpush1.msra.mxu0 %v379
    %1316 = vmatprep.subr.mxu0 0.0
    %1317 = vmatpush1.msra.mxu0 0.0
    %1318 = vmatprep.subr.mxu0 0.0
    %1319 = vmatpush1.msra.mxu0 0.0
    %1320 = vmatprep.subr.mxu0 0.0
    %1321 = vmatpush1.msra.mxu0 0.0
    %1322 = vmatprep.subr.mxu0 0.0
    %1323 = vmatpush1.msra.mxu0 0.0
    %1324 = vmatprep.subr.mxu0 0.0
    %1325 = vmatpush1.msra.mxu0 0.0
    %1326 = vmatprep.subr.mxu0 0.0
    %1327 = vmatpush1.msra.mxu0 0.0
    %1328 = vmatprep.subr.mxu0 0.0
    %1329 = vmatpush1.msra.mxu0 0.0
    %1330 = vmatprep.subr.mxu0 0.0
    %1331 = vmatpush1.msra.mxu0 0.0
    %1332 = vmatprep.subr.mxu0 0.0
    %1333 = vmatpush1.msra.mxu0 0.0
    %1334 = vmatprep.subr.mxu0 0.0
    %1335 = vmatpush1.msra.mxu0 0.0
    %1336 = vmatprep.subr.mxu0 0.0
    %1337 = vmatpush1.msra.mxu0 0.0
    %1338 = vmatprep.subr.mxu0 0.0
    %1339 = vmatpush1.msra.mxu0 0.0
    %1340 = vmatprep.subr.mxu0 0.0
    %1341 = vmatpush1.msra.mxu0 0.0
    %1342 = vmatprep.subr.mxu0 0.0
    %1343 = vmatpush1.msra.mxu0 0.0
    %1344 = vmatprep.subr.mxu0 0.0
    %1345 = vmatpush1.msra.mxu0 0.0
    %1346 = vmatprep.subr.mxu0 0.0
    %1347 = vmatpush1.msra.mxu0 0.0
    %1348 = vmatprep.mubr.f32.mxu0 0.0
    %1349 = vmatmul.mubr.f32.gmra.mrb[0].mxu0 %v1211
    %v1350 = vpop.f32.mrb[0].mxu0
    %v1351 = vadd.f32 0.0, %v1350
    %v1352 = vpop.f32.mrb[0].mxu0
    %v1353 = vadd.f32 0.0, %v1352
    %1354 = vdwg.mxu0
    %v1359 = vcombine.low %v1280, %v1282
    %v1360 = vcombine.low %v1351, %v1353
    %v1362 = vunpack.c.l.s4 1966171168
    %v1363 = vunpack.c.0.s8 %v1362
    %v1364 = vlaneseq
    %v1365 = vshrl.u32 %v1364, 7
    %v1366 = vsub.s32 %v1363, %v1365
    %v1367 = vrot.slane %v1359, %v1366
    %v1369 = vunpack.c.l.s4 1966171168
    %v1370 = vunpack.c.0.s8 %v1369
    %v1371 = vlaneseq
    %v1372 = vshrl.u32 %v1371, 7
    %v1373 = vsub.s32 %v1370, %v1372
    %v1374 = vrot.slane %v1360, %v1373
    %v1375 = vcombine.low %v1367, %v1374
    %v1376 = vcombine.high %v1367, %v1374
    %v1378 = vunpack.c.l.s4 1966171168
    %v1379 = vunpack.c.0.s8 %v1378
    %v1380 = vlaneseq
    %v1381 = vshrl.u32 %v1380, 7
    %v1382 = vsub.s32 %v1379, %v1381
    %v1383 = vrot.slane %v1375, %v1382
    %v1385 = vunpack.c.l.s4 1966171168
    %v1386 = vunpack.c.0.s8 %v1385
    %v1387 = vlaneseq
    %v1388 = vshrl.u32 %v1387, 7
    %v1389 = vsub.s32 %v1386, %v1388
    %v1390 = vrot.slane %v1376, %v1389
    %v1393 = vadd.f32 %v1192, %v1383
    %v1394 = vadd.f32 %v1194, %v1390
    %v1395 = vxor.u32 %v1393, 2147483648
    %v1396 = vxor.u32 %v1394, 2147483648
    %v1397 = vmul.f32 %v1395, 1.442695
    %v1398 = vpow.pop %v1397
    %v1399 = vmul.f32 %v1396, 1.442695
    %v1400 = vpow.pop %v1399
    %v1401 = vadd.f32 %v1398, 1.0
    %v1402 = vadd.f32 %v1400, 1.0
    %v1403 = vrcp.pop %v1401
    %v1404 = vmul.f32 1.0, %v1403
    %v1405 = vrcp.pop %v1402
    %v1406 = vmul.f32 1.0, %v1405
    %v1409 = vrot.slane %v1393, 1
    %v1410 = vrot.slane %v1394, 1
    %v1413 = vxor.u32 %v1409, 2147483648
    %v1414 = vxor.u32 %v1410, 2147483648
    %v1415 = vmul.f32 %v1413, 1.442695
    %v1416 = vpow.pop %v1415
    %v1417 = vmul.f32 %v1414, 1.442695
    %v1418 = vpow.pop %v1417
    %v1419 = vadd.f32 %v1416, 1.0
    %v1420 = vadd.f32 %v1418, 1.0
    %v1421 = vrcp.pop %v1419
    %v1422 = vmul.f32 1.0, %v1421
    %v1423 = vrcp.pop %v1420
    %v1424 = vmul.f32 1.0, %v1423
    %v1425 = vrot.slane %v1393, 2
    %v1426 = vrot.slane %v1394, 2
    %v1429 = vtanh.pop %v1425
    %v1430 = vtanh.pop %v1426
    %v1431 = vrot.slane %v1393, 3
    %v1432 = vrot.slane %v1394, 3
    %v1435 = vxor.u32 %v1431, 2147483648
    %v1436 = vxor.u32 %v1432, 2147483648
    %v1437 = vmul.f32 %v1435, 1.442695
    %v1438 = vpow.pop %v1437
    %v1439 = vmul.f32 %v1436, 1.442695
    %v1440 = vpow.pop %v1439
    %v1441 = vadd.f32 %v1438, 1.0
    %v1442 = vadd.f32 %v1440, 1.0
    %v1443 = vrcp.pop %v1441
    %v1444 = vmul.f32 1.0, %v1443
    %v1445 = vrcp.pop %v1442
    %v1446 = vmul.f32 1.0, %v1445
    %v1447 = vmul.f32 %v1422, %v1183
    %v1448 = vmul.f32 %v1424, %v1184
    %v1449 = vmul.f32 %v1404, %v1429
    %v1450 = vmul.f32 %v1406, %v1430
    %v1451 = vadd.f32 %v1447, %v1449
    %v1452 = vadd.f32 %v1448, %v1450
    %v1453 = vtanh.pop %v1451
    %v1454 = vtanh.pop %v1452
    %v1455 = vmul.f32 %v1444, %v1453
    %v1456 = vmul.f32 %v1446, %v1454
    %1457 = vst [vmem:[#allocation5 + $0x3] sm:$0x1] %v1455
    %1458 = vst [vmem:[#allocation5 + $0xb] sm:$0x1] %v1456
    %s1459 = scalar_lea.vmem [#allocation4], 4
    %v1460 = vld [vmem:[%s1459] ss:$8 sm:$0xf]
    %s1461 = scalar_lea.vmem [#allocation4], 36
    %v1462 = vld [vmem:[%s1461] ss:$8 sm:$0xf]
    %v1465 = vcombine.low %v1455, %v1456
    %v1467 = vunpack.c.l.s4 1966171168
    %v1468 = vunpack.c.0.s8 %v1467
    %v1469 = vlaneseq
    %v1470 = vshrl.u32 %v1469, 7
    %v1471 = vsub.s32 %v1468, %v1470
    %v1472 = vrot.slane %v1465, %v1471
    %v1474 = vunpack.c.l.s4 1966171168
    %v1475 = vunpack.c.0.s8 %v1474
    %v1476 = vlaneseq
    %v1477 = vshrl.u32 %v1476, 7
    %v1478 = vsub.s32 %v1475, %v1477
    %v1479 = vrot.slane %v1472, %v1478
    %1481 = vmatprep.subr.mxu0 %v318
    %1482 = vmatpush1.msra.mxu0 %v317
    %1483 = vmatprep.subr.mxu0 %v322
    %1484 = vmatpush1.msra.mxu0 %v321
    %1485 = vmatprep.subr.mxu0 %v326
    %1486 = vmatpush1.msra.mxu0 %v325
    %1487 = vmatprep.subr.mxu0 %v330
    %1488 = vmatpush1.msra.mxu0 %v329
    %1489 = vmatprep.subr.mxu0 %v334
    %1490 = vmatpush1.msra.mxu0 %v333
    %1491 = vmatprep.subr.mxu0 %v338
    %1492 = vmatpush1.msra.mxu0 %v337
    %1493 = vmatprep.subr.mxu0 %v342
    %1494 = vmatpush1.msra.mxu0 %v341
    %1495 = vmatprep.subr.mxu0 %v346
    %1496 = vmatpush1.msra.mxu0 %v345
    %1497 = vmatprep.subr.mxu0 %v350
    %1498 = vmatpush1.msra.mxu0 %v349
    %1499 = vmatprep.subr.mxu0 %v354
    %1500 = vmatpush1.msra.mxu0 %v353
    %1501 = vmatprep.subr.mxu0 %v358
    %1502 = vmatpush1.msra.mxu0 %v357
    %1503 = vmatprep.subr.mxu0 %v362
    %1504 = vmatpush1.msra.mxu0 %v361
    %1505 = vmatprep.subr.mxu0 %v366
    %1506 = vmatpush1.msra.mxu0 %v365
    %1507 = vmatprep.subr.mxu0 %v370
    %1508 = vmatpush1.msra.mxu0 %v369
    %1509 = vmatprep.subr.mxu0 %v374
    %1510 = vmatpush1.msra.mxu0 %v373
    %1511 = vmatprep.subr.mxu0 %v378
    %1512 = vmatpush1.msra.mxu0 %v377
    %1513 = vmatprep.subr.mxu0 0.0
    %1514 = vmatpush1.msra.mxu0 0.0
    %1515 = vmatprep.subr.mxu0 0.0
    %1516 = vmatpush1.msra.mxu0 0.0
    %1517 = vmatprep.subr.mxu0 0.0
    %1518 = vmatpush1.msra.mxu0 0.0
    %1519 = vmatprep.subr.mxu0 0.0
    %1520 = vmatpush1.msra.mxu0 0.0
    %1521 = vmatprep.subr.mxu0 0.0
    %1522 = vmatpush1.msra.mxu0 0.0
    %1523 = vmatprep.subr.mxu0 0.0
    %1524 = vmatpush1.msra.mxu0 0.0
    %1525 = vmatprep.subr.mxu0 0.0
    %1526 = vmatpush1.msra.mxu0 0.0
    %1527 = vmatprep.subr.mxu0 0.0
    %1528 = vmatpush1.msra.mxu0 0.0
    %1529 = vmatprep.subr.mxu0 0.0
    %1530 = vmatpush1.msra.mxu0 0.0
    %1531 = vmatprep.subr.mxu0 0.0
    %1532 = vmatpush1.msra.mxu0 0.0
    %1533 = vmatprep.subr.mxu0 0.0
    %1534 = vmatpush1.msra.mxu0 0.0
    %1535 = vmatprep.subr.mxu0 0.0
    %1536 = vmatpush1.msra.mxu0 0.0
    %1537 = vmatprep.subr.mxu0 0.0
    %1538 = vmatpush1.msra.mxu0 0.0
    %1539 = vmatprep.subr.mxu0 0.0
    %1540 = vmatpush1.msra.mxu0 0.0
    %1541 = vmatprep.subr.mxu0 0.0
    %1542 = vmatpush1.msra.mxu0 0.0
    %1543 = vmatprep.subr.mxu0 0.0
    %1544 = vmatpush1.msra.mxu0 0.0
    %1545 = vmatprep.mubr.f32.mxu0 0.0
    %1546 = vmatmul.mubr.f32.gmra.mrb[0].mxu0 %v1479
    %v1547 = vpop.f32.mrb[0].mxu0
    %v1548 = vadd.f32 0.0, %v1547
    %v1549 = vpop.f32.mrb[0].mxu0
    %v1550 = vadd.f32 0.0, %v1549
    %1551 = vdwg.mxu0
    %1552 = vmatprep.subr.mxu0 %v320
    %1553 = vmatpush1.msra.mxu0 %v319
    %1554 = vmatprep.subr.mxu0 %v324
    %1555 = vmatpush1.msra.mxu0 %v323
    %1556 = vmatprep.subr.mxu0 %v328
    %1557 = vmatpush1.msra.mxu0 %v327
    %1558 = vmatprep.subr.mxu0 %v332
    %1559 = vmatpush1.msra.mxu0 %v331
    %1560 = vmatprep.subr.mxu0 %v336
    %1561 = vmatpush1.msra.mxu0 %v335
    %1562 = vmatprep.subr.mxu0 %v340
    %1563 = vmatpush1.msra.mxu0 %v339
    %1564 = vmatprep.subr.mxu0 %v344
    %1565 = vmatpush1.msra.mxu0 %v343
    %1566 = vmatprep.subr.mxu0 %v348
    %1567 = vmatpush1.msra.mxu0 %v347
    %1568 = vmatprep.subr.mxu0 %v352
    %1569 = vmatpush1.msra.mxu0 %v351
    %1570 = vmatprep.subr.mxu0 %v356
    %1571 = vmatpush1.msra.mxu0 %v355
    %1572 = vmatprep.subr.mxu0 %v360
    %1573 = vmatpush1.msra.mxu0 %v359
    %1574 = vmatprep.subr.mxu0 %v364
    %1575 = vmatpush1.msra.mxu0 %v363
    %1576 = vmatprep.subr.mxu0 %v368
    %1577 = vmatpush1.msra.mxu0 %v367
    %1578 = vmatprep.subr.mxu0 %v372
    %1579 = vmatpush1.msra.mxu0 %v371
    %1580 = vmatprep.subr.mxu0 %v376
    %1581 = vmatpush1.msra.mxu0 %v375
    %1582 = vmatprep.subr.mxu0 %v380
    %1583 = vmatpush1.msra.mxu0 %v379
    %1584 = vmatprep.subr.mxu0 0.0
    %1585 = vmatpush1.msra.mxu0 0.0
    %1586 = vmatprep.subr.mxu0 0.0
    %1587 = vmatpush1.msra.mxu0 0.0
    %1588 = vmatprep.subr.mxu0 0.0
    %1589 = vmatpush1.msra.mxu0 0.0
    %1590 = vmatprep.subr.mxu0 0.0
    %1591 = vmatpush1.msra.mxu0 0.0
    %1592 = vmatprep.subr.mxu0 0.0
    %1593 = vmatpush1.msra.mxu0 0.0
    %1594 = vmatprep.subr.mxu0 0.0
    %1595 = vmatpush1.msra.mxu0 0.0
    %1596 = vmatprep.subr.mxu0 0.0
    %1597 = vmatpush1.msra.mxu0 0.0
    %1598 = vmatprep.subr.mxu0 0.0
    %1599 = vmatpush1.msra.mxu0 0.0
    %1600 = vmatprep.subr.mxu0 0.0
    %1601 = vmatpush1.msra.mxu0 0.0
    %1602 = vmatprep.subr.mxu0 0.0
    %1603 = vmatpush1.msra.mxu0 0.0
    %1604 = vmatprep.subr.mxu0 0.0
    %1605 = vmatpush1.msra.mxu0 0.0
    %1606 = vmatprep.subr.mxu0 0.0
    %1607 = vmatpush1.msra.mxu0 0.0
    %1608 = vmatprep.subr.mxu0 0.0
    %1609 = vmatpush1.msra.mxu0 0.0
    %1610 = vmatprep.subr.mxu0 0.0
    %1611 = vmatpush1.msra.mxu0 0.0
    %1612 = vmatprep.subr.mxu0 0.0
    %1613 = vmatpush1.msra.mxu0 0.0
    %1614 = vmatprep.subr.mxu0 0.0
    %1615 = vmatpush1.msra.mxu0 0.0
    %1616 = vmatprep.mubr.f32.mxu0 0.0
    %1617 = vmatmul.mubr.f32.gmra.mrb[0].mxu0 %v1479
    %v1618 = vpop.f32.mrb[0].mxu0
    %v1619 = vadd.f32 0.0, %v1618
    %v1620 = vpop.f32.mrb[0].mxu0
    %v1621 = vadd.f32 0.0, %v1620
    %1622 = vdwg.mxu0
    %v1627 = vcombine.low %v1548, %v1550
    %v1628 = vcombine.low %v1619, %v1621
    %v1630 = vunpack.c.l.s4 1966171168
    %v1631 = vunpack.c.0.s8 %v1630
    %v1632 = vlaneseq
    %v1633 = vshrl.u32 %v1632, 7
    %v1634 = vsub.s32 %v1631, %v1633
    %v1635 = vrot.slane %v1627, %v1634
    %v1637 = vunpack.c.l.s4 1966171168
    %v1638 = vunpack.c.0.s8 %v1637
    %v1639 = vlaneseq
    %v1640 = vshrl.u32 %v1639, 7
    %v1641 = vsub.s32 %v1638, %v1640
    %v1642 = vrot.slane %v1628, %v1641
    %v1643 = vcombine.low %v1635, %v1642
    %v1644 = vcombine.high %v1635, %v1642
    %v1646 = vunpack.c.l.s4 1966171168
    %v1647 = vunpack.c.0.s8 %v1646
    %v1648 = vlaneseq
    %v1649 = vshrl.u32 %v1648, 7
    %v1650 = vsub.s32 %v1647, %v1649
    %v1651 = vrot.slane %v1643, %v1650
    %v1653 = vunpack.c.l.s4 1966171168
    %v1654 = vunpack.c.0.s8 %v1653
    %v1655 = vlaneseq
    %v1656 = vshrl.u32 %v1655, 7
    %v1657 = vsub.s32 %v1654, %v1656
    %v1658 = vrot.slane %v1644, %v1657
    %v1661 = vadd.f32 %v1460, %v1651
    %v1662 = vadd.f32 %v1462, %v1658
    %v1663 = vxor.u32 %v1661, 2147483648
    %v1664 = vxor.u32 %v1662, 2147483648
    %v1665 = vmul.f32 %v1663, 1.442695
    %v1666 = vpow.pop %v1665
    %v1667 = vmul.f32 %v1664, 1.442695
    %v1668 = vpow.pop %v1667
    %v1669 = vadd.f32 %v1666, 1.0
    %v1670 = vadd.f32 %v1668, 1.0
    %v1671 = vrcp.pop %v1669
    %v1672 = vmul.f32 1.0, %v1671
    %v1673 = vrcp.pop %v1670
    %v1674 = vmul.f32 1.0, %v1673
    %v1677 = vrot.slane %v1661, 1
    %v1678 = vrot.slane %v1662, 1
    %v1681 = vxor.u32 %v1677, 2147483648
    %v1682 = vxor.u32 %v1678, 2147483648
    %v1683 = vmul.f32 %v1681, 1.442695
    %v1684 = vpow.pop %v1683
    %v1685 = vmul.f32 %v1682, 1.442695
    %v1686 = vpow.pop %v1685
    %v1687 = vadd.f32 %v1684, 1.0
    %v1688 = vadd.f32 %v1686, 1.0
    %v1689 = vrcp.pop %v1687
    %v1690 = vmul.f32 1.0, %v1689
    %v1691 = vrcp.pop %v1688
    %v1692 = vmul.f32 1.0, %v1691
    %v1693 = vrot.slane %v1661, 2
    %v1694 = vrot.slane %v1662, 2
    %v1697 = vtanh.pop %v1693
    %v1698 = vtanh.pop %v1694
    %v1699 = vrot.slane %v1661, 3
    %v1700 = vrot.slane %v1662, 3
    %v1703 = vxor.u32 %v1699, 2147483648
    %v1704 = vxor.u32 %v1700, 2147483648
    %v1705 = vmul.f32 %v1703, 1.442695
    %v1706 = vpow.pop %v1705
    %v1707 = vmul.f32 %v1704, 1.442695
    %v1708 = vpow.pop %v1707
    %v1709 = vadd.f32 %v1706, 1.0
    %v1710 = vadd.f32 %v1708, 1.0
    %v1711 = vrcp.pop %v1709
    %v1712 = vmul.f32 1.0, %v1711
    %v1713 = vrcp.pop %v1710
    %v1714 = vmul.f32 1.0, %v1713
    %v1715 = vmul.f32 %v1690, %v1451
    %v1716 = vmul.f32 %v1692, %v1452
    %v1717 = vmul.f32 %v1672, %v1697
    %v1718 = vmul.f32 %v1674, %v1698
    %v1719 = vadd.f32 %v1715, %v1717
    %v1720 = vadd.f32 %v1716, %v1718
    %v1721 = vtanh.pop %v1719
    %v1722 = vtanh.pop %v1720
    %v1723 = vmul.f32 %v1712, %v1721
    %v1724 = vmul.f32 %v1714, %v1722
    %1725 = vst [vmem:[#allocation5 + $0x4] sm:$0x1] %v1723
    %1726 = vst [vmem:[#allocation5 + $0xc] sm:$0x1] %v1724
    %s1727 = scalar_lea.vmem [#allocation4], 5
    %v1728 = vld [vmem:[%s1727] ss:$8 sm:$0xf]
    %s1729 = scalar_lea.vmem [#allocation4], 37
    %v1730 = vld [vmem:[%s1729] ss:$8 sm:$0xf]
    %v1733 = vcombine.low %v1723, %v1724
    %v1735 = vunpack.c.l.s4 1966171168
    %v1736 = vunpack.c.0.s8 %v1735
    %v1737 = vlaneseq
    %v1738 = vshrl.u32 %v1737, 7
    %v1739 = vsub.s32 %v1736, %v1738
    %v1740 = vrot.slane %v1733, %v1739
    %v1742 = vunpack.c.l.s4 1966171168
    %v1743 = vunpack.c.0.s8 %v1742
    %v1744 = vlaneseq
    %v1745 = vshrl.u32 %v1744, 7
    %v1746 = vsub.s32 %v1743, %v1745
    %v1747 = vrot.slane %v1740, %v1746
    %1749 = vmatprep.subr.mxu0 %v318
    %1750 = vmatpush1.msra.mxu0 %v317
    %1751 = vmatprep.subr.mxu0 %v322
    %1752 = vmatpush1.msra.mxu0 %v321
    %1753 = vmatprep.subr.mxu0 %v326
    %1754 = vmatpush1.msra.mxu0 %v325
    %1755 = vmatprep.subr.mxu0 %v330
    %1756 = vmatpush1.msra.mxu0 %v329
    %1757 = vmatprep.subr.mxu0 %v334
    %1758 = vmatpush1.msra.mxu0 %v333
    %1759 = vmatprep.subr.mxu0 %v338
    %1760 = vmatpush1.msra.mxu0 %v337
    %1761 = vmatprep.subr.mxu0 %v342
    %1762 = vmatpush1.msra.mxu0 %v341
    %1763 = vmatprep.subr.mxu0 %v346
    %1764 = vmatpush1.msra.mxu0 %v345
    %1765 = vmatprep.subr.mxu0 %v350
    %1766 = vmatpush1.msra.mxu0 %v349
    %1767 = vmatprep.subr.mxu0 %v354
    %1768 = vmatpush1.msra.mxu0 %v353
    %1769 = vmatprep.subr.mxu0 %v358
    %1770 = vmatpush1.msra.mxu0 %v357
    %1771 = vmatprep.subr.mxu0 %v362
    %1772 = vmatpush1.msra.mxu0 %v361
    %1773 = vmatprep.subr.mxu0 %v366
    %1774 = vmatpush1.msra.mxu0 %v365
    %1775 = vmatprep.subr.mxu0 %v370
    %1776 = vmatpush1.msra.mxu0 %v369
    %1777 = vmatprep.subr.mxu0 %v374
    %1778 = vmatpush1.msra.mxu0 %v373
    %1779 = vmatprep.subr.mxu0 %v378
    %1780 = vmatpush1.msra.mxu0 %v377
    %1781 = vmatprep.subr.mxu0 0.0
    %1782 = vmatpush1.msra.mxu0 0.0
    %1783 = vmatprep.subr.mxu0 0.0
    %1784 = vmatpush1.msra.mxu0 0.0
    %1785 = vmatprep.subr.mxu0 0.0
    %1786 = vmatpush1.msra.mxu0 0.0
    %1787 = vmatprep.subr.mxu0 0.0
    %1788 = vmatpush1.msra.mxu0 0.0
    %1789 = vmatprep.subr.mxu0 0.0
    %1790 = vmatpush1.msra.mxu0 0.0
    %1791 = vmatprep.subr.mxu0 0.0
    %1792 = vmatpush1.msra.mxu0 0.0
    %1793 = vmatprep.subr.mxu0 0.0
    %1794 = vmatpush1.msra.mxu0 0.0
    %1795 = vmatprep.subr.mxu0 0.0
    %1796 = vmatpush1.msra.mxu0 0.0
    %1797 = vmatprep.subr.mxu0 0.0
    %1798 = vmatpush1.msra.mxu0 0.0
    %1799 = vmatprep.subr.mxu0 0.0
    %1800 = vmatpush1.msra.mxu0 0.0
    %1801 = vmatprep.subr.mxu0 0.0
    %1802 = vmatpush1.msra.mxu0 0.0
    %1803 = vmatprep.subr.mxu0 0.0
    %1804 = vmatpush1.msra.mxu0 0.0
    %1805 = vmatprep.subr.mxu0 0.0
    %1806 = vmatpush1.msra.mxu0 0.0
    %1807 = vmatprep.subr.mxu0 0.0
    %1808 = vmatpush1.msra.mxu0 0.0
    %1809 = vmatprep.subr.mxu0 0.0
    %1810 = vmatpush1.msra.mxu0 0.0
    %1811 = vmatprep.subr.mxu0 0.0
    %1812 = vmatpush1.msra.mxu0 0.0
    %1813 = vmatprep.mubr.f32.mxu0 0.0
    %1814 = vmatmul.mubr.f32.gmra.mrb[0].mxu0 %v1747
    %v1815 = vpop.f32.mrb[0].mxu0
    %v1816 = vadd.f32 0.0, %v1815
    %v1817 = vpop.f32.mrb[0].mxu0
    %v1818 = vadd.f32 0.0, %v1817
    %1819 = vdwg.mxu0
    %1820 = vmatprep.subr.mxu0 %v320
    %1821 = vmatpush1.msra.mxu0 %v319
    %1822 = vmatprep.subr.mxu0 %v324
    %1823 = vmatpush1.msra.mxu0 %v323
    %1824 = vmatprep.subr.mxu0 %v328
    %1825 = vmatpush1.msra.mxu0 %v327
    %1826 = vmatprep.subr.mxu0 %v332
    %1827 = vmatpush1.msra.mxu0 %v331
    %1828 = vmatprep.subr.mxu0 %v336
    %1829 = vmatpush1.msra.mxu0 %v335
    %1830 = vmatprep.subr.mxu0 %v340
    %1831 = vmatpush1.msra.mxu0 %v339
    %1832 = vmatprep.subr.mxu0 %v344
    %1833 = vmatpush1.msra.mxu0 %v343
    %1834 = vmatprep.subr.mxu0 %v348
    %1835 = vmatpush1.msra.mxu0 %v347
    %1836 = vmatprep.subr.mxu0 %v352
    %1837 = vmatpush1.msra.mxu0 %v351
    %1838 = vmatprep.subr.mxu0 %v356
    %1839 = vmatpush1.msra.mxu0 %v355
    %1840 = vmatprep.subr.mxu0 %v360
    %1841 = vmatpush1.msra.mxu0 %v359
    %1842 = vmatprep.subr.mxu0 %v364
    %1843 = vmatpush1.msra.mxu0 %v363
    %1844 = vmatprep.subr.mxu0 %v368
    %1845 = vmatpush1.msra.mxu0 %v367
    %1846 = vmatprep.subr.mxu0 %v372
    %1847 = vmatpush1.msra.mxu0 %v371
    %1848 = vmatprep.subr.mxu0 %v376
    %1849 = vmatpush1.msra.mxu0 %v375
    %1850 = vmatprep.subr.mxu0 %v380
    %1851 = vmatpush1.msra.mxu0 %v379
    %1852 = vmatprep.subr.mxu0 0.0
    %1853 = vmatpush1.msra.mxu0 0.0
    %1854 = vmatprep.subr.mxu0 0.0
    %1855 = vmatpush1.msra.mxu0 0.0
    %1856 = vmatprep.subr.mxu0 0.0
    %1857 = vmatpush1.msra.mxu0 0.0
    %1858 = vmatprep.subr.mxu0 0.0
    %1859 = vmatpush1.msra.mxu0 0.0
    %1860 = vmatprep.subr.mxu0 0.0
    %1861 = vmatpush1.msra.mxu0 0.0
    %1862 = vmatprep.subr.mxu0 0.0
    %1863 = vmatpush1.msra.mxu0 0.0
    %1864 = vmatprep.subr.mxu0 0.0
    %1865 = vmatpush1.msra.mxu0 0.0
    %1866 = vmatprep.subr.mxu0 0.0
    %1867 = vmatpush1.msra.mxu0 0.0
    %1868 = vmatprep.subr.mxu0 0.0
    %1869 = vmatpush1.msra.mxu0 0.0
    %1870 = vmatprep.subr.mxu0 0.0
    %1871 = vmatpush1.msra.mxu0 0.0
    %1872 = vmatprep.subr.mxu0 0.0
    %1873 = vmatpush1.msra.mxu0 0.0
    %1874 = vmatprep.subr.mxu0 0.0
    %1875 = vmatpush1.msra.mxu0 0.0
    %1876 = vmatprep.subr.mxu0 0.0
    %1877 = vmatpush1.msra.mxu0 0.0
    %1878 = vmatprep.subr.mxu0 0.0
    %1879 = vmatpush1.msra.mxu0 0.0
    %1880 = vmatprep.subr.mxu0 0.0
    %1881 = vmatpush1.msra.mxu0 0.0
    %1882 = vmatprep.subr.mxu0 0.0
    %1883 = vmatpush1.msra.mxu0 0.0
    %1884 = vmatprep.mubr.f32.mxu0 0.0
    %1885 = vmatmul.mubr.f32.gmra.mrb[0].mxu0 %v1747
    %v1886 = vpop.f32.mrb[0].mxu0
    %v1887 = vadd.f32 0.0, %v1886
    %v1888 = vpop.f32.mrb[0].mxu0
    %v1889 = vadd.f32 0.0, %v1888
    %1890 = vdwg.mxu0
    %v1895 = vcombine.low %v1816, %v1818
    %v1896 = vcombine.low %v1887, %v1889
    %v1898 = vunpack.c.l.s4 1966171168
    %v1899 = vunpack.c.0.s8 %v1898
    %v1900 = vlaneseq
    %v1901 = vshrl.u32 %v1900, 7
    %v1902 = vsub.s32 %v1899, %v1901
    %v1903 = vrot.slane %v1895, %v1902
    %v1905 = vunpack.c.l.s4 1966171168
    %v1906 = vunpack.c.0.s8 %v1905
    %v1907 = vlaneseq
    %v1908 = vshrl.u32 %v1907, 7
    %v1909 = vsub.s32 %v1906, %v1908
    %v1910 = vrot.slane %v1896, %v1909
    %v1911 = vcombine.low %v1903, %v1910
    %v1912 = vcombine.high %v1903, %v1910
    %v1914 = vunpack.c.l.s4 1966171168
    %v1915 = vunpack.c.0.s8 %v1914
    %v1916 = vlaneseq
    %v1917 = vshrl.u32 %v1916, 7
    %v1918 = vsub.s32 %v1915, %v1917
    %v1919 = vrot.slane %v1911, %v1918
    %v1921 = vunpack.c.l.s4 1966171168
    %v1922 = vunpack.c.0.s8 %v1921
    %v1923 = vlaneseq
    %v1924 = vshrl.u32 %v1923, 7
    %v1925 = vsub.s32 %v1922, %v1924
    %v1926 = vrot.slane %v1912, %v1925
    %v1929 = vadd.f32 %v1728, %v1919
    %v1930 = vadd.f32 %v1730, %v1926
    %v1931 = vxor.u32 %v1929, 2147483648
    %v1932 = vxor.u32 %v1930, 2147483648
    %v1933 = vmul.f32 %v1931, 1.442695
    %v1934 = vpow.pop %v1933
    %v1935 = vmul.f32 %v1932, 1.442695
    %v1936 = vpow.pop %v1935
    %v1937 = vadd.f32 %v1934, 1.0
    %v1938 = vadd.f32 %v1936, 1.0
    %v1939 = vrcp.pop %v1937
    %v1940 = vmul.f32 1.0, %v1939
    %v1941 = vrcp.pop %v1938
    %v1942 = vmul.f32 1.0, %v1941
    %v1945 = vrot.slane %v1929, 1
    %v1946 = vrot.slane %v1930, 1
    %v1949 = vxor.u32 %v1945, 2147483648
    %v1950 = vxor.u32 %v1946, 2147483648
    %v1951 = vmul.f32 %v1949, 1.442695
    %v1952 = vpow.pop %v1951
    %v1953 = vmul.f32 %v1950, 1.442695
    %v1954 = vpow.pop %v1953
    %v1955 = vadd.f32 %v1952, 1.0
    %v1956 = vadd.f32 %v1954, 1.0
    %v1957 = vrcp.pop %v1955
    %v1958 = vmul.f32 1.0, %v1957
    %v1959 = vrcp.pop %v1956
    %v1960 = vmul.f32 1.0, %v1959
    %v1961 = vrot.slane %v1929, 2
    %v1962 = vrot.slane %v1930, 2
    %v1965 = vtanh.pop %v1961
    %v1966 = vtanh.pop %v1962
    %v1967 = vrot.slane %v1929, 3
    %v1968 = vrot.slane %v1930, 3
    %v1971 = vxor.u32 %v1967, 2147483648
    %v1972 = vxor.u32 %v1968, 2147483648
    %v1973 = vmul.f32 %v1971, 1.442695
    %v1974 = vpow.pop %v1973
    %v1975 = vmul.f32 %v1972, 1.442695
    %v1976 = vpow.pop %v1975
    %v1977 = vadd.f32 %v1974, 1.0
    %v1978 = vadd.f32 %v1976, 1.0
    %v1979 = vrcp.pop %v1977
    %v1980 = vmul.f32 1.0, %v1979
    %v1981 = vrcp.pop %v1978
    %v1982 = vmul.f32 1.0, %v1981
    %v1983 = vmul.f32 %v1958, %v1719
    %v1984 = vmul.f32 %v1960, %v1720
    %v1985 = vmul.f32 %v1940, %v1965
    %v1986 = vmul.f32 %v1942, %v1966
    %v1987 = vadd.f32 %v1983, %v1985
    %v1988 = vadd.f32 %v1984, %v1986
    %v1989 = vtanh.pop %v1987
    %v1990 = vtanh.pop %v1988
    %v1991 = vmul.f32 %v1980, %v1989
    %v1992 = vmul.f32 %v1982, %v1990
    %1993 = vst [vmem:[#allocation5 + $0x5] sm:$0x1] %v1991
    %1994 = vst [vmem:[#allocation5 + $0xd] sm:$0x1] %v1992
    %s1995 = scalar_lea.vmem [#allocation4], 6
    %v1996 = vld [vmem:[%s1995] ss:$8 sm:$0xf]
    %s1997 = scalar_lea.vmem [#allocation4], 38
    %v1998 = vld [vmem:[%s1997] ss:$8 sm:$0xf]
    %v2001 = vcombine.low %v1991, %v1992
    %v2003 = vunpack.c.l.s4 1966171168
    %v2004 = vunpack.c.0.s8 %v2003
    %v2005 = vlaneseq
    %v2006 = vshrl.u32 %v2005, 7
    %v2007 = vsub.s32 %v2004, %v2006
    %v2008 = vrot.slane %v2001, %v2007
    %v2010 = vunpack.c.l.s4 1966171168
    %v2011 = vunpack.c.0.s8 %v2010
    %v2012 = vlaneseq
    %v2013 = vshrl.u32 %v2012, 7
    %v2014 = vsub.s32 %v2011, %v2013
    %v2015 = vrot.slane %v2008, %v2014
    %2017 = vmatprep.subr.mxu0 %v318
    %2018 = vmatpush1.msra.mxu0 %v317
    %2019 = vmatprep.subr.mxu0 %v322
    %2020 = vmatpush1.msra.mxu0 %v321
    %2021 = vmatprep.subr.mxu0 %v326
    %2022 = vmatpush1.msra.mxu0 %v325
    %2023 = vmatprep.subr.mxu0 %v330
    %2024 = vmatpush1.msra.mxu0 %v329
    %2025 = vmatprep.subr.mxu0 %v334
    %2026 = vmatpush1.msra.mxu0 %v333
    %2027 = vmatprep.subr.mxu0 %v338
    %2028 = vmatpush1.msra.mxu0 %v337
    %2029 = vmatprep.subr.mxu0 %v342
    %2030 = vmatpush1.msra.mxu0 %v341
    %2031 = vmatprep.subr.mxu0 %v346
    %2032 = vmatpush1.msra.mxu0 %v345
    %2033 = vmatprep.subr.mxu0 %v350
    %2034 = vmatpush1.msra.mxu0 %v349
    %2035 = vmatprep.subr.mxu0 %v354
    %2036 = vmatpush1.msra.mxu0 %v353
    %2037 = vmatprep.subr.mxu0 %v358
    %2038 = vmatpush1.msra.mxu0 %v357
    %2039 = vmatprep.subr.mxu0 %v362
    %2040 = vmatpush1.msra.mxu0 %v361
    %2041 = vmatprep.subr.mxu0 %v366
    %2042 = vmatpush1.msra.mxu0 %v365
    %2043 = vmatprep.subr.mxu0 %v370
    %2044 = vmatpush1.msra.mxu0 %v369
    %2045 = vmatprep.subr.mxu0 %v374
    %2046 = vmatpush1.msra.mxu0 %v373
    %2047 = vmatprep.subr.mxu0 %v378
    %2048 = vmatpush1.msra.mxu0 %v377
    %2049 = vmatprep.subr.mxu0 0.0
    %2050 = vmatpush1.msra.mxu0 0.0
    %2051 = vmatprep.subr.mxu0 0.0
    %2052 = vmatpush1.msra.mxu0 0.0
    %2053 = vmatprep.subr.mxu0 0.0
    %2054 = vmatpush1.msra.mxu0 0.0
    %2055 = vmatprep.subr.mxu0 0.0
    %2056 = vmatpush1.msra.mxu0 0.0
    %2057 = vmatprep.subr.mxu0 0.0
    %2058 = vmatpush1.msra.mxu0 0.0
    %2059 = vmatprep.subr.mxu0 0.0
    %2060 = vmatpush1.msra.mxu0 0.0
    %2061 = vmatprep.subr.mxu0 0.0
    %2062 = vmatpush1.msra.mxu0 0.0
    %2063 = vmatprep.subr.mxu0 0.0
    %2064 = vmatpush1.msra.mxu0 0.0
    %2065 = vmatprep.subr.mxu0 0.0
    %2066 = vmatpush1.msra.mxu0 0.0
    %2067 = vmatprep.subr.mxu0 0.0
    %2068 = vmatpush1.msra.mxu0 0.0
    %2069 = vmatprep.subr.mxu0 0.0
    %2070 = vmatpush1.msra.mxu0 0.0
    %2071 = vmatprep.subr.mxu0 0.0
    %2072 = vmatpush1.msra.mxu0 0.0
    %2073 = vmatprep.subr.mxu0 0.0
    %2074 = vmatpush1.msra.mxu0 0.0
    %2075 = vmatprep.subr.mxu0 0.0
    %2076 = vmatpush1.msra.mxu0 0.0
    %2077 = vmatprep.subr.mxu0 0.0
    %2078 = vmatpush1.msra.mxu0 0.0
    %2079 = vmatprep.subr.mxu0 0.0
    %2080 = vmatpush1.msra.mxu0 0.0
    %2081 = vmatprep.mubr.f32.mxu0 0.0
    %2082 = vmatmul.mubr.f32.gmra.mrb[0].mxu0 %v2015
    %v2083 = vpop.f32.mrb[0].mxu0
    %v2084 = vadd.f32 0.0, %v2083
    %v2085 = vpop.f32.mrb[0].mxu0
    %v2086 = vadd.f32 0.0, %v2085
    %2087 = vdwg.mxu0
    %2088 = vmatprep.subr.mxu0 %v320
    %2089 = vmatpush1.msra.mxu0 %v319
    %2090 = vmatprep.subr.mxu0 %v324
    %2091 = vmatpush1.msra.mxu0 %v323
    %2092 = vmatprep.subr.mxu0 %v328
    %2093 = vmatpush1.msra.mxu0 %v327
    %2094 = vmatprep.subr.mxu0 %v332
    %2095 = vmatpush1.msra.mxu0 %v331
    %2096 = vmatprep.subr.mxu0 %v336
    %2097 = vmatpush1.msra.mxu0 %v335
    %2098 = vmatprep.subr.mxu0 %v340
    %2099 = vmatpush1.msra.mxu0 %v339
    %2100 = vmatprep.subr.mxu0 %v344
    %2101 = vmatpush1.msra.mxu0 %v343
    %2102 = vmatprep.subr.mxu0 %v348
    %2103 = vmatpush1.msra.mxu0 %v347
    %2104 = vmatprep.subr.mxu0 %v352
    %2105 = vmatpush1.msra.mxu0 %v351
    %2106 = vmatprep.subr.mxu0 %v356
    %2107 = vmatpush1.msra.mxu0 %v355
    %2108 = vmatprep.subr.mxu0 %v360
    %2109 = vmatpush1.msra.mxu0 %v359
    %2110 = vmatprep.subr.mxu0 %v364
    %2111 = vmatpush1.msra.mxu0 %v363
    %2112 = vmatprep.subr.mxu0 %v368
    %2113 = vmatpush1.msra.mxu0 %v367
    %2114 = vmatprep.subr.mxu0 %v372
    %2115 = vmatpush1.msra.mxu0 %v371
    %2116 = vmatprep.subr.mxu0 %v376
    %2117 = vmatpush1.msra.mxu0 %v375
    %2118 = vmatprep.subr.mxu0 %v380
    %2119 = vmatpush1.msra.mxu0 %v379
    %2120 = vmatprep.subr.mxu0 0.0
    %2121 = vmatpush1.msra.mxu0 0.0
    %2122 = vmatprep.subr.mxu0 0.0
    %2123 = vmatpush1.msra.mxu0 0.0
    %2124 = vmatprep.subr.mxu0 0.0
    %2125 = vmatpush1.msra.mxu0 0.0
    %2126 = vmatprep.subr.mxu0 0.0
    %2127 = vmatpush1.msra.mxu0 0.0
    %2128 = vmatprep.subr.mxu0 0.0
    %2129 = vmatpush1.msra.mxu0 0.0
    %2130 = vmatprep.subr.mxu0 0.0
    %2131 = vmatpush1.msra.mxu0 0.0
    %2132 = vmatprep.subr.mxu0 0.0
    %2133 = vmatpush1.msra.mxu0 0.0
    %2134 = vmatprep.subr.mxu0 0.0
    %2135 = vmatpush1.msra.mxu0 0.0
    %2136 = vmatprep.subr.mxu0 0.0
    %2137 = vmatpush1.msra.mxu0 0.0
    %2138 = vmatprep.subr.mxu0 0.0
    %2139 = vmatpush1.msra.mxu0 0.0
    %2140 = vmatprep.subr.mxu0 0.0
    %2141 = vmatpush1.msra.mxu0 0.0
    %2142 = vmatprep.subr.mxu0 0.0
    %2143 = vmatpush1.msra.mxu0 0.0
    %2144 = vmatprep.subr.mxu0 0.0
    %2145 = vmatpush1.msra.mxu0 0.0
    %2146 = vmatprep.subr.mxu0 0.0
    %2147 = vmatpush1.msra.mxu0 0.0
    %2148 = vmatprep.subr.mxu0 0.0
    %2149 = vmatpush1.msra.mxu0 0.0
    %2150 = vmatprep.subr.mxu0 0.0
    %2151 = vmatpush1.msra.mxu0 0.0
    %2152 = vmatprep.mubr.f32.mxu0 0.0
    %2153 = vmatmul.mubr.f32.gmra.mrb[0].mxu0 %v2015
    %v2154 = vpop.f32.mrb[0].mxu0
    %v2155 = vadd.f32 0.0, %v2154
    %v2156 = vpop.f32.mrb[0].mxu0
    %v2157 = vadd.f32 0.0, %v2156
    %2158 = vdwg.mxu0
    %v2163 = vcombine.low %v2084, %v2086
    %v2164 = vcombine.low %v2155, %v2157
    %v2166 = vunpack.c.l.s4 1966171168
    %v2167 = vunpack.c.0.s8 %v2166
    %v2168 = vlaneseq
    %v2169 = vshrl.u32 %v2168, 7
    %v2170 = vsub.s32 %v2167, %v2169
    %v2171 = vrot.slane %v2163, %v2170
    %v2173 = vunpack.c.l.s4 1966171168
    %v2174 = vunpack.c.0.s8 %v2173
    %v2175 = vlaneseq
    %v2176 = vshrl.u32 %v2175, 7
    %v2177 = vsub.s32 %v2174, %v2176
    %v2178 = vrot.slane %v2164, %v2177
    %v2179 = vcombine.low %v2171, %v2178
    %v2180 = vcombine.high %v2171, %v2178
    %v2182 = vunpack.c.l.s4 1966171168
    %v2183 = vunpack.c.0.s8 %v2182
    %v2184 = vlaneseq
    %v2185 = vshrl.u32 %v2184, 7
    %v2186 = vsub.s32 %v2183, %v2185
    %v2187 = vrot.slane %v2179, %v2186
    %v2189 = vunpack.c.l.s4 1966171168
    %v2190 = vunpack.c.0.s8 %v2189
    %v2191 = vlaneseq
    %v2192 = vshrl.u32 %v2191, 7
    %v2193 = vsub.s32 %v2190, %v2192
    %v2194 = vrot.slane %v2180, %v2193
    %v2197 = vadd.f32 %v1996, %v2187
    %v2198 = vadd.f32 %v1998, %v2194
    %v2199 = vxor.u32 %v2197, 2147483648
    %v2200 = vxor.u32 %v2198, 2147483648
    %v2201 = vmul.f32 %v2199, 1.442695
    %v2202 = vpow.pop %v2201
    %v2203 = vmul.f32 %v2200, 1.442695
    %v2204 = vpow.pop %v2203
    %v2205 = vadd.f32 %v2202, 1.0
    %v2206 = vadd.f32 %v2204, 1.0
    %v2207 = vrcp.pop %v2205
    %v2208 = vmul.f32 1.0, %v2207
    %v2209 = vrcp.pop %v2206
    %v2210 = vmul.f32 1.0, %v2209
    %v2213 = vrot.slane %v2197, 1
    %v2214 = vrot.slane %v2198, 1
    %v2217 = vxor.u32 %v2213, 2147483648
    %v2218 = vxor.u32 %v2214, 2147483648
    %v2219 = vmul.f32 %v2217, 1.442695
    %v2220 = vpow.pop %v2219
    %v2221 = vmul.f32 %v2218, 1.442695
    %v2222 = vpow.pop %v2221
    %v2223 = vadd.f32 %v2220, 1.0
    %v2224 = vadd.f32 %v2222, 1.0
    %v2225 = vrcp.pop %v2223
    %v2226 = vmul.f32 1.0, %v2225
    %v2227 = vrcp.pop %v2224
    %v2228 = vmul.f32 1.0, %v2227
    %v2229 = vrot.slane %v2197, 2
    %v2230 = vrot.slane %v2198, 2
    %v2233 = vtanh.pop %v2229
    %v2234 = vtanh.pop %v2230
    %v2235 = vrot.slane %v2197, 3
    %v2236 = vrot.slane %v2198, 3
    %v2239 = vxor.u32 %v2235, 2147483648
    %v2240 = vxor.u32 %v2236, 2147483648
    %v2241 = vmul.f32 %v2239, 1.442695
    %v2242 = vpow.pop %v2241
    %v2243 = vmul.f32 %v2240, 1.442695
    %v2244 = vpow.pop %v2243
    %v2245 = vadd.f32 %v2242, 1.0
    %v2246 = vadd.f32 %v2244, 1.0
    %v2247 = vrcp.pop %v2245
    %v2248 = vmul.f32 1.0, %v2247
    %v2249 = vrcp.pop %v2246
    %v2250 = vmul.f32 1.0, %v2249
    %v2251 = vmul.f32 %v2226, %v1987
    %v2252 = vmul.f32 %v2228, %v1988
    %v2253 = vmul.f32 %v2208, %v2233
    %v2254 = vmul.f32 %v2210, %v2234
    %v2255 = vadd.f32 %v2251, %v2253
    %v2256 = vadd.f32 %v2252, %v2254
    %v2257 = vtanh.pop %v2255
    %v2258 = vtanh.pop %v2256
    %v2259 = vmul.f32 %v2248, %v2257
    %v2260 = vmul.f32 %v2250, %v2258
    %2261 = vst [vmem:[#allocation5 + $0x6] sm:$0x1] %v2259
    %2262 = vst [vmem:[#allocation5 + $0xe] sm:$0x1] %v2260
    %s2263 = scalar_lea.vmem [#allocation4], 7
    %v2264 = vld [vmem:[%s2263] ss:$8 sm:$0xf]
    %s2265 = scalar_lea.vmem [#allocation4], 39
    %v2266 = vld [vmem:[%s2265] ss:$8 sm:$0xf]
    %v2269 = vcombine.low %v2259, %v2260
    %v2271 = vunpack.c.l.s4 1966171168
    %v2272 = vunpack.c.0.s8 %v2271
    %v2273 = vlaneseq
    %v2274 = vshrl.u32 %v2273, 7
    %v2275 = vsub.s32 %v2272, %v2274
    %v2276 = vrot.slane %v2269, %v2275
    %v2278 = vunpack.c.l.s4 1966171168
    %v2279 = vunpack.c.0.s8 %v2278
    %v2280 = vlaneseq
    %v2281 = vshrl.u32 %v2280, 7
    %v2282 = vsub.s32 %v2279, %v2281
    %v2283 = vrot.slane %v2276, %v2282
    %2285 = vmatprep.subr.mxu0 %v318
    %2286 = vmatpush1.msra.mxu0 %v317
    %2287 = vmatprep.subr.mxu0 %v322
    %2288 = vmatpush1.msra.mxu0 %v321
    %2289 = vmatprep.subr.mxu0 %v326
    %2290 = vmatpush1.msra.mxu0 %v325
    %2291 = vmatprep.subr.mxu0 %v330
    %2292 = vmatpush1.msra.mxu0 %v329
    %2293 = vmatprep.subr.mxu0 %v334
    %2294 = vmatpush1.msra.mxu0 %v333
    %2295 = vmatprep.subr.mxu0 %v338
    %2296 = vmatpush1.msra.mxu0 %v337
    %2297 = vmatprep.subr.mxu0 %v342
    %2298 = vmatpush1.msra.mxu0 %v341
    %2299 = vmatprep.subr.mxu0 %v346
    %2300 = vmatpush1.msra.mxu0 %v345
    %2301 = vmatprep.subr.mxu0 %v350
    %2302 = vmatpush1.msra.mxu0 %v349
    %2303 = vmatprep.subr.mxu0 %v354
    %2304 = vmatpush1.msra.mxu0 %v353
    %2305 = vmatprep.subr.mxu0 %v358
    %2306 = vmatpush1.msra.mxu0 %v357
    %2307 = vmatprep.subr.mxu0 %v362
    %2308 = vmatpush1.msra.mxu0 %v361
    %2309 = vmatprep.subr.mxu0 %v366
    %2310 = vmatpush1.msra.mxu0 %v365
    %2311 = vmatprep.subr.mxu0 %v370
    %2312 = vmatpush1.msra.mxu0 %v369
    %2313 = vmatprep.subr.mxu0 %v374
    %2314 = vmatpush1.msra.mxu0 %v373
    %2315 = vmatprep.subr.mxu0 %v378
    %2316 = vmatpush1.msra.mxu0 %v377
    %2317 = vmatprep.subr.mxu0 0.0
    %2318 = vmatpush1.msra.mxu0 0.0
    %2319 = vmatprep.subr.mxu0 0.0
    %2320 = vmatpush1.msra.mxu0 0.0
    %2321 = vmatprep.subr.mxu0 0.0
    %2322 = vmatpush1.msra.mxu0 0.0
    %2323 = vmatprep.subr.mxu0 0.0
    %2324 = vmatpush1.msra.mxu0 0.0
    %2325 = vmatprep.subr.mxu0 0.0
    %2326 = vmatpush1.msra.mxu0 0.0
    %2327 = vmatprep.subr.mxu0 0.0
    %2328 = vmatpush1.msra.mxu0 0.0
    %2329 = vmatprep.subr.mxu0 0.0
    %2330 = vmatpush1.msra.mxu0 0.0
    %2331 = vmatprep.subr.mxu0 0.0
    %2332 = vmatpush1.msra.mxu0 0.0
    %2333 = vmatprep.subr.mxu0 0.0
    %2334 = vmatpush1.msra.mxu0 0.0
    %2335 = vmatprep.subr.mxu0 0.0
    %2336 = vmatpush1.msra.mxu0 0.0
    %2337 = vmatprep.subr.mxu0 0.0
    %2338 = vmatpush1.msra.mxu0 0.0
    %2339 = vmatprep.subr.mxu0 0.0
    %2340 = vmatpush1.msra.mxu0 0.0
    %2341 = vmatprep.subr.mxu0 0.0
    %2342 = vmatpush1.msra.mxu0 0.0
    %2343 = vmatprep.subr.mxu0 0.0
    %2344 = vmatpush1.msra.mxu0 0.0
    %2345 = vmatprep.subr.mxu0 0.0
    %2346 = vmatpush1.msra.mxu0 0.0
    %2347 = vmatprep.subr.mxu0 0.0
    %2348 = vmatpush1.msra.mxu0 0.0
    %2349 = vmatprep.mubr.f32.mxu0 0.0
    %2350 = vmatmul.mubr.f32.gmra.mrb[0].mxu0 %v2283
    %v2351 = vpop.f32.mrb[0].mxu0
    %v2352 = vadd.f32 0.0, %v2351
    %v2353 = vpop.f32.mrb[0].mxu0
    %v2354 = vadd.f32 0.0, %v2353
    %2355 = vdwg.mxu0
    %2356 = vmatprep.subr.mxu0 %v320
    %2357 = vmatpush1.msra.mxu0 %v319
    %2358 = vmatprep.subr.mxu0 %v324
    %2359 = vmatpush1.msra.mxu0 %v323
    %2360 = vmatprep.subr.mxu0 %v328
    %2361 = vmatpush1.msra.mxu0 %v327
    %2362 = vmatprep.subr.mxu0 %v332
    %2363 = vmatpush1.msra.mxu0 %v331
    %2364 = vmatprep.subr.mxu0 %v336
    %2365 = vmatpush1.msra.mxu0 %v335
    %2366 = vmatprep.subr.mxu0 %v340
    %2367 = vmatpush1.msra.mxu0 %v339
    %2368 = vmatprep.subr.mxu0 %v344
    %2369 = vmatpush1.msra.mxu0 %v343
    %2370 = vmatprep.subr.mxu0 %v348
    %2371 = vmatpush1.msra.mxu0 %v347
    %2372 = vmatprep.subr.mxu0 %v352
    %2373 = vmatpush1.msra.mxu0 %v351
    %2374 = vmatprep.subr.mxu0 %v356
    %2375 = vmatpush1.msra.mxu0 %v355
    %2376 = vmatprep.subr.mxu0 %v360
    %2377 = vmatpush1.msra.mxu0 %v359
    %2378 = vmatprep.subr.mxu0 %v364
    %2379 = vmatpush1.msra.mxu0 %v363
    %2380 = vmatprep.subr.mxu0 %v368
    %2381 = vmatpush1.msra.mxu0 %v367
    %2382 = vmatprep.subr.mxu0 %v372
    %2383 = vmatpush1.msra.mxu0 %v371
    %2384 = vmatprep.subr.mxu0 %v376
    %2385 = vmatpush1.msra.mxu0 %v375
    %2386 = vmatprep.subr.mxu0 %v380
    %2387 = vmatpush1.msra.mxu0 %v379
    %2388 = vmatprep.subr.mxu0 0.0
    %2389 = vmatpush1.msra.mxu0 0.0
    %2390 = vmatprep.subr.mxu0 0.0
    %2391 = vmatpush1.msra.mxu0 0.0
    %2392 = vmatprep.subr.mxu0 0.0
    %2393 = vmatpush1.msra.mxu0 0.0
    %2394 = vmatprep.subr.mxu0 0.0
    %2395 = vmatpush1.msra.mxu0 0.0
    %2396 = vmatprep.subr.mxu0 0.0
    %2397 = vmatpush1.msra.mxu0 0.0
    %2398 = vmatprep.subr.mxu0 0.0
    %2399 = vmatpush1.msra.mxu0 0.0
    %2400 = vmatprep.subr.mxu0 0.0
    %2401 = vmatpush1.msra.mxu0 0.0
    %2402 = vmatprep.subr.mxu0 0.0
    %2403 = vmatpush1.msra.mxu0 0.0
    %2404 = vmatprep.subr.mxu0 0.0
    %2405 = vmatpush1.msra.mxu0 0.0
    %2406 = vmatprep.subr.mxu0 0.0
    %2407 = vmatpush1.msra.mxu0 0.0
    %2408 = vmatprep.subr.mxu0 0.0
    %2409 = vmatpush1.msra.mxu0 0.0
    %2410 = vmatprep.subr.mxu0 0.0
    %2411 = vmatpush1.msra.mxu0 0.0
    %2412 = vmatprep.subr.mxu0 0.0
    %2413 = vmatpush1.msra.mxu0 0.0
    %2414 = vmatprep.subr.mxu0 0.0
    %2415 = vmatpush1.msra.mxu0 0.0
    %2416 = vmatprep.subr.mxu0 0.0
    %2417 = vmatpush1.msra.mxu0 0.0
    %2418 = vmatprep.subr.mxu0 0.0
    %2419 = vmatpush1.msra.mxu0 0.0
    %2420 = vmatprep.mubr.f32.mxu0 0.0
    %2421 = vmatmul.mubr.f32.gmra.mrb[0].mxu0 %v2283
    %v2422 = vpop.f32.mrb[0].mxu0
    %v2423 = vadd.f32 0.0, %v2422
    %v2424 = vpop.f32.mrb[0].mxu0
    %v2425 = vadd.f32 0.0, %v2424
    %2426 = vdwg.mxu0
    %v2431 = vcombine.low %v2352, %v2354
    %v2432 = vcombine.low %v2423, %v2425
    %v2434 = vunpack.c.l.s4 1966171168
    %v2435 = vunpack.c.0.s8 %v2434
    %v2436 = vlaneseq
    %v2437 = vshrl.u32 %v2436, 7
    %v2438 = vsub.s32 %v2435, %v2437
    %v2439 = vrot.slane %v2431, %v2438
    %v2441 = vunpack.c.l.s4 1966171168
    %v2442 = vunpack.c.0.s8 %v2441
    %v2443 = vlaneseq
    %v2444 = vshrl.u32 %v2443, 7
    %v2445 = vsub.s32 %v2442, %v2444
    %v2446 = vrot.slane %v2432, %v2445
    %v2447 = vcombine.low %v2439, %v2446
    %v2448 = vcombine.high %v2439, %v2446
    %v2450 = vunpack.c.l.s4 1966171168
    %v2451 = vunpack.c.0.s8 %v2450
    %v2452 = vlaneseq
    %v2453 = vshrl.u32 %v2452, 7
    %v2454 = vsub.s32 %v2451, %v2453
    %v2455 = vrot.slane %v2447, %v2454
    %v2457 = vunpack.c.l.s4 1966171168
    %v2458 = vunpack.c.0.s8 %v2457
    %v2459 = vlaneseq
    %v2460 = vshrl.u32 %v2459, 7
    %v2461 = vsub.s32 %v2458, %v2460
    %v2462 = vrot.slane %v2448, %v2461
    %v2465 = vadd.f32 %v2264, %v2455
    %v2466 = vadd.f32 %v2266, %v2462
    %v2467 = vxor.u32 %v2465, 2147483648
    %v2468 = vxor.u32 %v2466, 2147483648
    %v2469 = vmul.f32 %v2467, 1.442695
    %v2470 = vpow.pop %v2469
    %v2471 = vmul.f32 %v2468, 1.442695
    %v2472 = vpow.pop %v2471
    %v2473 = vadd.f32 %v2470, 1.0
    %v2474 = vadd.f32 %v2472, 1.0
    %v2475 = vrcp.pop %v2473
    %v2476 = vmul.f32 1.0, %v2475
    %v2477 = vrcp.pop %v2474
    %v2478 = vmul.f32 1.0, %v2477
    %v2481 = vrot.slane %v2465, 1
    %v2482 = vrot.slane %v2466, 1
    %v2485 = vxor.u32 %v2481, 2147483648
    %v2486 = vxor.u32 %v2482, 2147483648
    %v2487 = vmul.f32 %v2485, 1.442695
    %v2488 = vpow.pop %v2487
    %v2489 = vmul.f32 %v2486, 1.442695
    %v2490 = vpow.pop %v2489
    %v2491 = vadd.f32 %v2488, 1.0
    %v2492 = vadd.f32 %v2490, 1.0
    %v2493 = vrcp.pop %v2491
    %v2494 = vmul.f32 1.0, %v2493
    %v2495 = vrcp.pop %v2492
    %v2496 = vmul.f32 1.0, %v2495
    %v2497 = vrot.slane %v2465, 2
    %v2498 = vrot.slane %v2466, 2
    %v2501 = vtanh.pop %v2497
    %v2502 = vtanh.pop %v2498
    %v2503 = vrot.slane %v2465, 3
    %v2504 = vrot.slane %v2466, 3
    %v2507 = vxor.u32 %v2503, 2147483648
    %v2508 = vxor.u32 %v2504, 2147483648
    %v2509 = vmul.f32 %v2507, 1.442695
    %v2510 = vpow.pop %v2509
    %v2511 = vmul.f32 %v2508, 1.442695
    %v2512 = vpow.pop %v2511
    %v2513 = vadd.f32 %v2510, 1.0
    %v2514 = vadd.f32 %v2512, 1.0
    %v2515 = vrcp.pop %v2513
    %v2516 = vmul.f32 1.0, %v2515
    %v2517 = vrcp.pop %v2514
    %v2518 = vmul.f32 1.0, %v2517
    %v2519 = vmul.f32 %v2494, %v2255
    %v2520 = vmul.f32 %v2496, %v2256
    %v2521 = vmul.f32 %v2476, %v2501
    %v2522 = vmul.f32 %v2478, %v2502
    %v2523 = vadd.f32 %v2519, %v2521
    %v2524 = vadd.f32 %v2520, %v2522
    %v2525 = vtanh.pop %v2523
    %v2526 = vtanh.pop %v2524
    %v2527 = vmul.f32 %v2516, %v2525
    %v2528 = vmul.f32 %v2518, %v2526
    %2529 = vst [vmem:[#allocation5 + $0x7] sm:$0x1] %v2527
    %2530 = vst [vmem:[#allocation5 + $0xf] sm:$0x1] %v2528
    %v2533 = vcombine.low %v2527, %v2528
    %v2535 = vunpack.c.l.s4 1966171168
    %v2536 = vunpack.c.0.s8 %v2535
    %v2537 = vlaneseq
    %v2538 = vshrl.u32 %v2537, 7
    %v2539 = vsub.s32 %v2536, %v2538
    %v2540 = vrot.slane %v2533, %v2539
    %v2542 = vunpack.c.l.s4 1966171168
    %v2543 = vunpack.c.0.s8 %v2542
    %v2544 = vlaneseq
    %v2545 = vshrl.u32 %v2544, 7
    %v2546 = vsub.s32 %v2543, %v2545
    %v2547 = vrot.slane %v2540, %v2546
    %2549 = vst [vmem:[#allocation2] sm:$0x3] %v2547
    %v2552 = vcombine.low %v2523, %v2524
    %v2554 = vunpack.c.l.s4 1966171168
    %v2555 = vunpack.c.0.s8 %v2554
    %v2556 = vlaneseq
    %v2557 = vshrl.u32 %v2556, 7
    %v2558 = vsub.s32 %v2555, %v2557
    %v2559 = vrot.slane %v2552, %v2558
    %v2561 = vunpack.c.l.s4 1966171168
    %v2562 = vunpack.c.0.s8 %v2561
    %v2563 = vlaneseq
    %v2564 = vshrl.u32 %v2563, 7
    %v2565 = vsub.s32 %v2562, %v2564
    %v2566 = vrot.slane %v2559, %v2565
    %2568 = vst [vmem:[#allocation3] sm:$0x3] %v2566
    %v2569 = vld [vmem:[#allocation5] sm:$0xff]
    %v2570 = vld [vmem:[#allocation5 + $0x8] sm:$0xff]
    %2571 = vst [vmem:[#allocation12] sm:$0xff] %v2569
    %2572 = vst [vmem:[#allocation12 + $0x8] sm:$0xff] %v2570
    // Predicated region
    $region34: #{tpu_custom_call.1} parent=1 // pred_check
      _
    $region35: #{tpu_custom_call.1} parent=1 // pred_check_branch
      %2574 = sbr.rel (0) target = $region37
    $region36: #{tpu_custom_call.1} parent=1 // pred_region
      %s2576 = ssub.s32 256, 256
      %2577 = vsyncadd [#allocation8], %s2576
      %s2578 = sshll.u32 [#allocation12], 4
      %s2579 = int_to_ptr.vmem [resolvable:$true] %s2578
      %2584 = dma.vmem_to_hbm [thread:$0]  %s2579, 256, %s4, [#allocation8], 128, 128, 8
    $region37: #{tpu_custom_call.1} parent=1 // pred_fallthru
      _
    // Predicated region
    $region38: #{tpu_custom_call.1} parent=1 // pred_check
      _
    $region39: #{tpu_custom_call.1} parent=1 // pred_check_branch
      %2586 = sbr.rel (0) target = $region41
    $region40: #{tpu_custom_call.1} parent=1 // pred_region
      %2587 = dma.done [#allocation8], 256
    $region41: #{tpu_custom_call.1} parent=1 // pred_fallthru
      _
    %2588 = vsyncpa [#allocation7], 1
    %2589 = vsyncpa [#allocation10], 1
    %2590 = vsyncpa [#allocation8], 1

</llo_original>
